<compile_context>
chip_gen: v7x
topology: tpu7x:2x2x1
jax: 0.10.0
libtpu: 0.0.40
codegen_flags: <defaults>
</compile_context>

<pallas_src>
import numpy as np
import jax
import jax.numpy as jnp
from jax.experimental import pallas as pl
from jax.experimental.pallas import tpu as pltpu

# ----------------------------- config ---------------------------------------
B = 2            # batch
S = 8            # sequence length
H = 32           # d_model
NUM_HEADS = 4
DH = H // NUM_HEADS
DFF = 64         # feed-forward hidden dim
L = 2            # number of encoder layers
VOCAB = 64
NUM_BUCKETS = 32
MAX_DISTANCE = 128
EPS = 1e-6

BS = B * S               # batch folded into rows
NEG_INF = -1e30          # cross-batch attention mask value


# ----------------------------- Pallas kernel --------------------------------
def t5_encoder_kernel(ids_ref, emb_ref, hmask_ref, bias_ref, ln1_ref,
                      wqkv_ref, wo_ref, ln2_ref, wi_ref, wf_ref, lnf_ref,
                      o_ref):
    """Full L-layer T5 encoder stack, all batches/heads in one program.

    ids_ref:   (BS, 1)  int32 token ids (batch folded into rows)
    emb_ref:   (VOCAB, H)        token embedding table
    hmask_ref: (NH*BS, H)        head mask: 1 where row-head == lane-head
    bias_ref:  (NH*BS, BS)       rel-pos bias (+ -1e30 on cross-batch entries)
    ln1_ref:   (L, 1, H)         pre-attention RMSNorm scales
    wqkv_ref:  (L, H, 3H) bf16   fused Q|K|V projection
    wo_ref:    (L, H, H)  bf16   attention output projection
    ln2_ref:   (L, 1, H)         pre-FFN RMSNorm scales
    wi_ref:    (L, H, DFF) bf16  FFN in-projection
    wf_ref:    (L, DFF, H) bf16  FFN out-projection
    lnf_ref:   (1, H)            final RMSNorm scale
    o_ref:     (BS, H)           last hidden state (rows = b*S + s)
    """
    f32 = jnp.float32
    bf16 = jnp.bfloat16

    def rms_norm(v, scale):
        # T5 LayerNorm: no mean subtraction, no bias.
        var = jnp.mean(v * v, axis=-1, keepdims=True)
        return v * jax.lax.rsqrt(var + EPS) * scale

    # ---- fused embedding lookup: one-hot(ids) @ emb  (one small MXU op) ----
    ids = ids_ref[...]                                            # (BS, 1)
    vocab_iota = jax.lax.broadcasted_iota(jnp.int32, (BS, VOCAB), 1)
    onehot = (vocab_iota == ids).astype(f32)                      # (BS, VOCAB)
    x = jnp.dot(onehot, emb_ref[...], preferred_element_type=f32)  # (BS, H)

    hmask = hmask_ref[...]                                        # (NH*BS, H)
    bias = bias_ref[...]                                          # (NH*BS, BS)

    for l in range(L):
        # ---- self-attention block --------------------------------------
        h = rms_norm(x, ln1_ref[l])                               # (BS, H)
        qkv = jnp.dot(h.astype(bf16), wqkv_ref[l],
                      preferred_element_type=f32)                 # (BS, 3H)
        q = qkv[:, 0:H]
        k = qkv[:, H:2 * H]
        v = qkv[:, 2 * H:3 * H]

        # Stack Q once per head along rows and zero out the other heads'
        # channels; the contraction with k.T then yields per-(head,batch,query)
        # scores in one matmul.  T5: no 1/sqrt(d_k) scaling.
        qbig = jnp.concatenate([q] * NUM_HEADS, axis=0) * hmask   # (NH*BS, H)
        scores = jnp.dot(qbig, k.T, preferred_element_type=f32) + bias
        # bias already holds -1e30 on cross-batch key positions.
        scores = scores - jnp.max(scores, axis=-1, keepdims=True)
        p = jnp.exp(scores)
        p = p * pl.reciprocal(jnp.sum(p, axis=-1, keepdims=True), approx=True)

        # Context for every (head, batch, query) row against all values, then
        # keep only each head's own channels and fold the head blocks back
        # onto the (BS, H) rows.
        ctx_all = jnp.dot(p, v, preferred_element_type=f32) * hmask  # (NH*BS, H)
        ctx = ctx_all[0:BS]
        for hd in range(1, NUM_HEADS):
            ctx = ctx + ctx_all[hd * BS:(hd + 1) * BS]            # (BS, H)

        # Single output projection (replaces per-head W_o accumulation).
        x = x + jnp.dot(ctx.astype(bf16), wo_ref[l],
                        preferred_element_type=f32)               # residual

        # ---- feed-forward block -----------------------------------------
        h2 = rms_norm(x, ln2_ref[l])
        f = jnp.maximum(
            jnp.dot(h2.astype(bf16), wi_ref[l],
                    preferred_element_type=f32), 0.0)             # (BS, DFF)
        x = x + jnp.dot(f.astype(bf16), wf_ref[l],
                        preferred_element_type=f32)               # residual

    # ---- final RMSNorm ----------------------------------------------------
    o_ref[...] = rms_norm(x, lnf_ref[...]).astype(o_ref.dtype)


# ----------------------------- wrapper ---------------------------------------
def _relative_position_bucket(rel_pos, num_buckets=NUM_BUCKETS,
                              max_distance=MAX_DISTANCE):
    # Bidirectional bucketing as in T5 (glue, not hot path).
    num_buckets = num_buckets // 2
    ret = (rel_pos > 0).astype(jnp.int32) * num_buckets
    n = jnp.abs(rel_pos)
    max_exact = num_buckets // 2
    is_small = n < max_exact
    n_f = jnp.maximum(n, 1).astype(jnp.float32)
    val_if_large = max_exact + (
        jnp.log(n_f / max_exact) / np.log(max_distance / max_exact)
        * (num_buckets - max_exact)).astype(jnp.int32)
    val_if_large = jnp.minimum(val_if_large, num_buckets - 1)
    return ret + jnp.where(is_small, n, val_if_large)


def _relative_position_bias(rel_bias_emb):
    ctx = jnp.arange(S)[:, None]       # query positions
    mem = jnp.arange(S)[None, :]       # key positions
    rel = mem - ctx                    # (S, S)
    buckets = _relative_position_bucket(rel)           # (S, S) int32
    bias = rel_bias_emb[buckets]                        # (S, S, NUM_HEADS)
    return jnp.transpose(bias, (2, 0, 1))               # (NUM_HEADS, S, S)


def _build_attention_bias(rel_bias):
    """(NH*B*S, B*S): rel-pos bias on same-batch entries, -1e30 elsewhere."""
    same_batch = jnp.eye(B, dtype=jnp.float32)[None, :, None, :, None]
    rel = rel_bias[:, None, :, None, :]                 # (NH,1,S,1,S)
    bias = rel * same_batch + NEG_INF * (1.0 - same_batch)   # (NH,B,S,B,S)
    return bias.reshape(NUM_HEADS * BS, BS)


def _build_head_mask():
    """(NH*B*S, H): 1 where the row's head owns the lane's channel block."""
    row_head = jnp.arange(NUM_HEADS * BS)[:, None] // BS
    col_head = jnp.arange(H)[None, :] // DH
    return (row_head == col_head).astype(jnp.float32)


def simplified_t5_encoder(input_ids, params):
    """Returns last_hidden_state [B, S, H] (== SimplifiedT5Encoder.forward)."""
    ids = input_ids.reshape(BS, 1).astype(jnp.int32)

    rel_bias = _relative_position_bias(params["rel_bias_emb"])   # (NH, S, S)
    attn_bias = _build_attention_bias(rel_bias)                  # (NH*BS, BS)
    headmask = _build_head_mask()                                # (NH*BS, H)

    # Fuse Q|K|V and pre-cast matmul weights to bf16 (f32 accumulation kept).
    wqkv = jnp.concatenate(
        [params["wq"], params["wk"], params["wv"]], axis=-1
    ).astype(jnp.bfloat16)                                       # (L, H, 3H)
    wo = params["wo"].astype(jnp.bfloat16)
    wi = params["wi"].astype(jnp.bfloat16)
    wf = params["wf"].astype(jnp.bfloat16)
    ln1 = params["ln1"].reshape(L, 1, H)
    ln2 = params["ln2"].reshape(L, 1, H)
    lnf = params["lnf"].reshape(1, H)

    def full(shape):
        return pl.BlockSpec(shape, lambda i: (0,) * len(shape))

    out = pl.pallas_call(
        t5_encoder_kernel,
        out_shape=jax.ShapeDtypeStruct((BS, H), jnp.float32),
        grid=(1,),
        in_specs=[
            full((BS, 1)),                  # ids
            full((VOCAB, H)),               # emb
            full((NUM_HEADS * BS, H)),      # head mask
            full((NUM_HEADS * BS, BS)),     # attention bias (+ batch mask)
            full((L, 1, H)),                # ln1
            full((L, H, 3 * H)),            # wqkv (bf16)
            full((L, H, H)),                # wo   (bf16)
            full((L, 1, H)),                # ln2
            full((L, H, DFF)),              # wi   (bf16)
            full((L, DFF, H)),              # wf   (bf16)
            full((1, H)),                   # lnf
        ],
        out_specs=full((BS, H)),
        compiler_params=pltpu.CompilerParams(
            dimension_semantics=("arbitrary",)),
    )(ids, params["emb"], headmask, attn_bias, ln1, wqkv, wo, ln2, wi, wf, lnf)
    return out.reshape(B, S, H)


def init_params(key):
    ks = jax.random.split(key, 10)
    scale = 0.02
    return {
        "emb": jax.random.normal(ks[0], (VOCAB, H), jnp.float32) * scale,
        "rel_bias_emb": jax.random.normal(
            ks[1], (NUM_BUCKETS, NUM_HEADS), jnp.float32) * scale,
        "ln1": jnp.ones((L, H), jnp.float32),
        "wq": jax.random.normal(ks[2], (L, H, H), jnp.float32) * scale,
        "wk": jax.random.normal(ks[3], (L, H, H), jnp.float32) * scale,
        "wv": jax.random.normal(ks[4], (L, H, H), jnp.float32) * scale,
        "wo": jax.random.normal(ks[5], (L, H, H), jnp.float32) * scale,
        "ln2": jnp.ones((L, H), jnp.float32),
        "wi": jax.random.normal(ks[6], (L, H, DFF), jnp.float32) * scale,
        "wf": jax.random.normal(ks[7], (L, DFF, H), jnp.float32) * scale,
        "lnf": jnp.ones((1, H), jnp.float32),
    }


if __name__ == "__main__":
    key = jax.random.PRNGKey(0)
    k_ids, k_params = jax.random.split(key)
    input_ids = jax.random.randint(k_ids, (B, S), 0, VOCAB, dtype=jnp.int32)
    params = init_params(k_params)

    # TODO(synk): attention_mask handling (assumes full, unmasked attention).
    fwd = jax.jit(simplified_t5_encoder)
    last_hidden_state = fwd(input_ids, params)
    jax.block_until_ready(last_hidden_state)
    assert last_hidden_state.shape == (B, S, H)
    assert bool(jnp.all(jnp.isfinite(last_hidden_state)))
    print("KERNEL_OK")
</pallas_src>

<mosaic_0001>
module attributes {stable_mosaic.version = 11 : i64} {
  func.func @t5_encoder_kernel(%arg0: i32, %arg1: memref<16x1xi32, #tpu.memory_space<vmem>>, %arg2: memref<64x32xf32, #tpu.memory_space<vmem>>, %arg3: memref<64x32xf32, #tpu.memory_space<vmem>>, %arg4: memref<64x16xf32, #tpu.memory_space<vmem>>, %arg5: memref<2x1x32xf32, #tpu.memory_space<vmem>>, %arg6: memref<2x32x96xbf16, #tpu.memory_space<vmem>>, %arg7: memref<2x32x32xbf16, #tpu.memory_space<vmem>>, %arg8: memref<2x1x32xf32, #tpu.memory_space<vmem>>, %arg9: memref<2x32x64xbf16, #tpu.memory_space<vmem>>, %arg10: memref<2x64x32xbf16, #tpu.memory_space<vmem>>, %arg11: memref<1x32xf32, #tpu.memory_space<vmem>>, %arg12: memref<16x32xf32, #tpu.memory_space<vmem>>) attributes {dimension_semantics = [#tpu.dimension_semantics<arbitrary>], iteration_bounds = array<i64: 1>, scalar_prefetch = 0 : i64, scratch_operands = 0 : i64, tpu.core_type = #tpu.core_type<tc>, window_params = [{pipeline_mode = #tpu.pipeline_mode<synchronous>, transform_indices = @transform_0, window_bounds = array<i64: 16, 1>}, {pipeline_mode = #tpu.pipeline_mode<synchronous>, transform_indices = @transform_1, window_bounds = array<i64: 64, 32>}, {pipeline_mode = #tpu.pipeline_mode<synchronous>, transform_indices = @transform_2, window_bounds = array<i64: 64, 32>}, {pipeline_mode = #tpu.pipeline_mode<synchronous>, transform_indices = @transform_3, window_bounds = array<i64: 64, 16>}, {pipeline_mode = #tpu.pipeline_mode<synchronous>, transform_indices = @transform_4, window_bounds = array<i64: 2, 1, 32>}, {pipeline_mode = #tpu.pipeline_mode<synchronous>, transform_indices = @transform_5, window_bounds = array<i64: 2, 32, 96>}, {pipeline_mode = #tpu.pipeline_mode<synchronous>, transform_indices = @transform_6, window_bounds = array<i64: 2, 32, 32>}, {pipeline_mode = #tpu.pipeline_mode<synchronous>, transform_indices = @transform_7, window_bounds = array<i64: 2, 1, 32>}, {pipeline_mode = #tpu.pipeline_mode<synchronous>, transform_indices = @transform_8, window_bounds = array<i64: 2, 32, 64>}, {pipeline_mode = #tpu.pipeline_mode<synchronous>, transform_indices = @transform_9, window_bounds = array<i64: 2, 64, 32>}, {pipeline_mode = #tpu.pipeline_mode<synchronous>, transform_indices = @transform_10, window_bounds = array<i64: 1, 32>}, {pipeline_mode = #tpu.pipeline_mode<synchronous>, transform_indices = @transform_11, window_bounds = array<i64: 16, 32>}]} {
    %c0 = arith.constant 0 : index
    %c0_0 = arith.constant 0 : index
    %0 = vector.load %arg1[%c0, %c0_0] : memref<16x1xi32, #tpu.memory_space<vmem>>, vector<16x1xi32>
    %1 = tpu.iota {dimensions = array<i32: 1>} : vector<16x64xi32>
    %2 = vector.broadcast %0 : vector<16x1xi32> to vector<16x64xi32>
    %3 = arith.cmpi eq, %1, %2 : vector<16x64xi32>
    %4 = arith.extui %3 : vector<16x64xi1> to vector<16x64xi32>
    %5 = arith.sitofp %4 : vector<16x64xi32> to vector<16x64xf32>
    %c0_1 = arith.constant 0 : index
    %c0_2 = arith.constant 0 : index
    %6 = vector.load %arg2[%c0_1, %c0_2] : memref<64x32xf32, #tpu.memory_space<vmem>>, vector<64x32xf32>
    %cst = arith.constant dense<0.000000e+00> : vector<16x32xf32>
    %7 = tpu.matmul %5, %6, %cst {dimension_numbers = #tpu.dot_dimension_numbers<[1], [0], [0], [1], [0, 0, 1, 1], [], []>} : vector<16x64xf32>, vector<64x32xf32>, vector<16x32xf32> -> vector<16x32xf32>
    %c0_3 = arith.constant 0 : index
    %c0_4 = arith.constant 0 : index
    %8 = vector.load %arg3[%c0_3, %c0_4] : memref<64x32xf32, #tpu.memory_space<vmem>>, vector<64x32xf32>
    %c0_5 = arith.constant 0 : index
    %c0_6 = arith.constant 0 : index
    %9 = vector.load %arg4[%c0_5, %c0_6] : memref<64x16xf32, #tpu.memory_space<vmem>>, vector<64x16xf32>
    %c0_7 = arith.constant 0 : index
    %c0_8 = arith.constant 0 : index
    %c0_9 = arith.constant 0 : index
    %10 = vector.load %arg5[%c0_7, %c0_8, %c0_9] : memref<2x1x32xf32, #tpu.memory_space<vmem>>, vector<1x1x32xf32>
    %11 = vector.shape_cast %10 : vector<1x1x32xf32> to vector<1x32xf32>
    %12 = arith.mulf %7, %7 : vector<16x32xf32>
    %cst_10 = arith.constant dense<0.000000e+00> : vector<16xf32>
    %13 = vector.multi_reduction <add>, %12, %cst_10 [1] : vector<16x32xf32> to vector<16xf32>
    %14 = vector.shape_cast %13 : vector<16xf32> to vector<16x1xf32>
    %cst_11 = arith.constant 3.200000e+01 : f32
    %15 = vector.broadcast %cst_11 : f32 to vector<16x1xf32>
    %16 = arith.divf %14, %15 : vector<16x1xf32>
    %cst_12 = arith.constant 9.99999997E-7 : f32
    %17 = vector.broadcast %cst_12 : f32 to vector<16x1xf32>
    %18 = arith.addf %16, %17 : vector<16x1xf32>
    %19 = math.rsqrt %18 : vector<16x1xf32>
    %20 = vector.broadcast %19 : vector<16x1xf32> to vector<16x32xf32>
    %21 = arith.mulf %7, %20 : vector<16x32xf32>
    %22 = vector.broadcast %11 : vector<1x32xf32> to vector<16x32xf32>
    %23 = arith.mulf %21, %22 : vector<16x32xf32>
    %24 = arith.truncf %23 : vector<16x32xf32> to vector<16x32xbf16>
    %c0_13 = arith.constant 0 : index
    %c0_14 = arith.constant 0 : index
    %c0_15 = arith.constant 0 : index
    %25 = vector.load %arg6[%c0_13, %c0_14, %c0_15] : memref<2x32x96xbf16, #tpu.memory_space<vmem>>, vector<1x32x96xbf16>
    %26 = vector.shape_cast %25 : vector<1x32x96xbf16> to vector<32x96xbf16>
    %cst_16 = arith.constant dense<0.000000e+00> : vector<16x96xf32>
    %27 = tpu.matmul %24, %26, %cst_16 {dimension_numbers = #tpu.dot_dimension_numbers<[1], [0], [0], [1], [0, 0, 1, 1], [], []>} : vector<16x32xbf16>, vector<32x96xbf16>, vector<16x96xf32> -> vector<16x96xf32>
    %28 = vector.extract_strided_slice %27 {offsets = [0, 0], sizes = [16, 32], strides = [1, 1]} : vector<16x96xf32> to vector<16x32xf32>
    %29 = vector.extract_strided_slice %27 {offsets = [0, 32], sizes = [16, 32], strides = [1, 1]} : vector<16x96xf32> to vector<16x32xf32>
    %30 = vector.extract_strided_slice %27 {offsets = [0, 64], sizes = [16, 32], strides = [1, 1]} : vector<16x96xf32> to vector<16x32xf32>
    %31 = tpu.concatenate %28, %28, %28, %28 in 0 : vector<16x32xf32>, vector<16x32xf32>, vector<16x32xf32>, vector<16x32xf32> -> vector<64x32xf32>
    %32 = arith.mulf %31, %8 : vector<64x32xf32>
    %33 = tpu.transpose %29, [1, 0] : vector<16x32xf32> -> vector<32x16xf32>
    %cst_17 = arith.constant dense<0.000000e+00> : vector<64x16xf32>
    %34 = tpu.matmul %32, %33, %cst_17 {dimension_numbers = #tpu.dot_dimension_numbers<[1], [0], [0], [1], [0, 0, 1, 1], [], []>} : vector<64x32xf32>, vector<32x16xf32>, vector<64x16xf32> -> vector<64x16xf32>
    %35 = arith.addf %34, %9 : vector<64x16xf32>
    %cst_18 = arith.constant dense<0xFF800000> : vector<64xf32>
    %36 = vector.multi_reduction <maximumf>, %35, %cst_18 [1] : vector<64x16xf32> to vector<64xf32>
    %37 = vector.shape_cast %36 : vector<64xf32> to vector<64x1xf32>
    %38 = vector.broadcast %37 : vector<64x1xf32> to vector<64x16xf32>
    %39 = arith.subf %35, %38 : vector<64x16xf32>
    %40 = math.exp %39 : vector<64x16xf32>
    %cst_19 = arith.constant dense<0.000000e+00> : vector<64xf32>
    %41 = vector.multi_reduction <add>, %40, %cst_19 [1] : vector<64x16xf32> to vector<64xf32>
    %42 = vector.shape_cast %41 : vector<64xf32> to vector<64x1xf32>
    %43 = tpu.reciprocal %42 {approx = true} : vector<64x1xf32> -> vector<64x1xf32>
    %44 = vector.broadcast %43 : vector<64x1xf32> to vector<64x16xf32>
    %45 = arith.mulf %40, %44 : vector<64x16xf32>
    %cst_20 = arith.constant dense<0.000000e+00> : vector<64x32xf32>
    %46 = tpu.matmul %45, %30, %cst_20 {dimension_numbers = #tpu.dot_dimension_numbers<[1], [0], [0], [1], [0, 0, 1, 1], [], []>} : vector<64x16xf32>, vector<16x32xf32>, vector<64x32xf32> -> vector<64x32xf32>
    %47 = arith.mulf %46, %8 : vector<64x32xf32>
    %48 = vector.extract_strided_slice %47 {offsets = [0, 0], sizes = [16, 32], strides = [1, 1]} : vector<64x32xf32> to vector<16x32xf32>
    %49 = vector.extract_strided_slice %47 {offsets = [16, 0], sizes = [16, 32], strides = [1, 1]} : vector<64x32xf32> to vector<16x32xf32>
    %50 = arith.addf %48, %49 : vector<16x32xf32>
    %51 = vector.extract_strided_slice %47 {offsets = [32, 0], sizes = [16, 32], strides = [1, 1]} : vector<64x32xf32> to vector<16x32xf32>
    %52 = arith.addf %50, %51 : vector<16x32xf32>
    %53 = vector.extract_strided_slice %47 {offsets = [48, 0], sizes = [16, 32], strides = [1, 1]} : vector<64x32xf32> to vector<16x32xf32>
    %54 = arith.addf %52, %53 : vector<16x32xf32>
    %55 = arith.truncf %54 : vector<16x32xf32> to vector<16x32xbf16>
    %c0_21 = arith.constant 0 : index
    %c0_22 = arith.constant 0 : index
    %c0_23 = arith.constant 0 : index
    %56 = vector.load %arg7[%c0_21, %c0_22, %c0_23] : memref<2x32x32xbf16, #tpu.memory_space<vmem>>, vector<1x32x32xbf16>
    %57 = vector.shape_cast %56 : vector<1x32x32xbf16> to vector<32x32xbf16>
    %cst_24 = arith.constant dense<0.000000e+00> : vector<16x32xf32>
    %58 = tpu.matmul %55, %57, %cst_24 {dimension_numbers = #tpu.dot_dimension_numbers<[1], [0], [0], [1], [0, 0, 1, 1], [], []>} : vector<16x32xbf16>, vector<32x32xbf16>, vector<16x32xf32> -> vector<16x32xf32>
    %59 = arith.addf %7, %58 : vector<16x32xf32>
    %c0_25 = arith.constant 0 : index
    %c0_26 = arith.constant 0 : index
    %c0_27 = arith.constant 0 : index
    %60 = vector.load %arg8[%c0_25, %c0_26, %c0_27] : memref<2x1x32xf32, #tpu.memory_space<vmem>>, vector<1x1x32xf32>
    %61 = vector.shape_cast %60 : vector<1x1x32xf32> to vector<1x32xf32>
    %62 = arith.mulf %59, %59 : vector<16x32xf32>
    %cst_28 = arith.constant dense<0.000000e+00> : vector<16xf32>
    %63 = vector.multi_reduction <add>, %62, %cst_28 [1] : vector<16x32xf32> to vector<16xf32>
    %64 = vector.shape_cast %63 : vector<16xf32> to vector<16x1xf32>
    %cst_29 = arith.constant 3.200000e+01 : f32
    %65 = vector.broadcast %cst_29 : f32 to vector<16x1xf32>
    %66 = arith.divf %64, %65 : vector<16x1xf32>
    %cst_30 = arith.constant 9.99999997E-7 : f32
    %67 = vector.broadcast %cst_30 : f32 to vector<16x1xf32>
    %68 = arith.addf %66, %67 : vector<16x1xf32>
    %69 = math.rsqrt %68 : vector<16x1xf32>
    %70 = vector.broadcast %69 : vector<16x1xf32> to vector<16x32xf32>
    %71 = arith.mulf %59, %70 : vector<16x32xf32>
    %72 = vector.broadcast %61 : vector<1x32xf32> to vector<16x32xf32>
    %73 = arith.mulf %71, %72 : vector<16x32xf32>
    %74 = arith.truncf %73 : vector<16x32xf32> to vector<16x32xbf16>
    %c0_31 = arith.constant 0 : index
    %c0_32 = arith.constant 0 : index
    %c0_33 = arith.constant 0 : index
    %75 = vector.load %arg9[%c0_31, %c0_32, %c0_33] : memref<2x32x64xbf16, #tpu.memory_space<vmem>>, vector<1x32x64xbf16>
    %76 = vector.shape_cast %75 : vector<1x32x64xbf16> to vector<32x64xbf16>
    %cst_34 = arith.constant dense<0.000000e+00> : vector<16x64xf32>
    %77 = tpu.matmul %74, %76, %cst_34 {dimension_numbers = #tpu.dot_dimension_numbers<[1], [0], [0], [1], [0, 0, 1, 1], [], []>} : vector<16x32xbf16>, vector<32x64xbf16>, vector<16x64xf32> -> vector<16x64xf32>
    %cst_35 = arith.constant 0.000000e+00 : f32
    %78 = vector.broadcast %cst_35 : f32 to vector<16x64xf32>
    %79 = arith.maximumf %77, %78 : vector<16x64xf32>
    %80 = arith.truncf %79 : vector<16x64xf32> to vector<16x64xbf16>
    %c0_36 = arith.constant 0 : index
    %c0_37 = arith.constant 0 : index
    %c0_38 = arith.constant 0 : index
    %81 = vector.load %arg10[%c0_36, %c0_37, %c0_38] : memref<2x64x32xbf16, #tpu.memory_space<vmem>>, vector<1x64x32xbf16>
    %82 = vector.shape_cast %81 : vector<1x64x32xbf16> to vector<64x32xbf16>
    %cst_39 = arith.constant dense<0.000000e+00> : vector<16x32xf32>
    %83 = tpu.matmul %80, %82, %cst_39 {dimension_numbers = #tpu.dot_dimension_numbers<[1], [0], [0], [1], [0, 0, 1, 1], [], []>} : vector<16x64xbf16>, vector<64x32xbf16>, vector<16x32xf32> -> vector<16x32xf32>
    %84 = arith.addf %59, %83 : vector<16x32xf32>
    %c1 = arith.constant 1 : index
    %c0_40 = arith.constant 0 : index
    %c0_41 = arith.constant 0 : index
    %85 = vector.load %arg5[%c1, %c0_40, %c0_41] : memref<2x1x32xf32, #tpu.memory_space<vmem>>, vector<1x1x32xf32>
    %86 = vector.shape_cast %85 : vector<1x1x32xf32> to vector<1x32xf32>
    %87 = arith.mulf %84, %84 : vector<16x32xf32>
    %cst_42 = arith.constant dense<0.000000e+00> : vector<16xf32>
    %88 = vector.multi_reduction <add>, %87, %cst_42 [1] : vector<16x32xf32> to vector<16xf32>
    %89 = vector.shape_cast %88 : vector<16xf32> to vector<16x1xf32>
    %cst_43 = arith.constant 3.200000e+01 : f32
    %90 = vector.broadcast %cst_43 : f32 to vector<16x1xf32>
    %91 = arith.divf %89, %90 : vector<16x1xf32>
    %cst_44 = arith.constant 9.99999997E-7 : f32
    %92 = vector.broadcast %cst_44 : f32 to vector<16x1xf32>
    %93 = arith.addf %91, %92 : vector<16x1xf32>
    %94 = math.rsqrt %93 : vector<16x1xf32>
    %95 = vector.broadcast %94 : vector<16x1xf32> to vector<16x32xf32>
    %96 = arith.mulf %84, %95 : vector<16x32xf32>
    %97 = vector.broadcast %86 : vector<1x32xf32> to vector<16x32xf32>
    %98 = arith.mulf %96, %97 : vector<16x32xf32>
    %99 = arith.truncf %98 : vector<16x32xf32> to vector<16x32xbf16>
    %c1_45 = arith.constant 1 : index
    %c0_46 = arith.constant 0 : index
    %c0_47 = arith.constant 0 : index
    %100 = vector.load %arg6[%c1_45, %c0_46, %c0_47] : memref<2x32x96xbf16, #tpu.memory_space<vmem>>, vector<1x32x96xbf16>
    %101 = vector.shape_cast %100 : vector<1x32x96xbf16> to vector<32x96xbf16>
    %cst_48 = arith.constant dense<0.000000e+00> : vector<16x96xf32>
    %102 = tpu.matmul %99, %101, %cst_48 {dimension_numbers = #tpu.dot_dimension_numbers<[1], [0], [0], [1], [0, 0, 1, 1], [], []>} : vector<16x32xbf16>, vector<32x96xbf16>, vector<16x96xf32> -> vector<16x96xf32>
    %103 = vector.extract_strided_slice %102 {offsets = [0, 0], sizes = [16, 32], strides = [1, 1]} : vector<16x96xf32> to vector<16x32xf32>
    %104 = vector.extract_strided_slice %102 {offsets = [0, 32], sizes = [16, 32], strides = [1, 1]} : vector<16x96xf32> to vector<16x32xf32>
    %105 = vector.extract_strided_slice %102 {offsets = [0, 64], sizes = [16, 32], strides = [1, 1]} : vector<16x96xf32> to vector<16x32xf32>
    %106 = tpu.concatenate %103, %103, %103, %103 in 0 : vector<16x32xf32>, vector<16x32xf32>, vector<16x32xf32>, vector<16x32xf32> -> vector<64x32xf32>
    %107 = arith.mulf %106, %8 : vector<64x32xf32>
    %108 = tpu.transpose %104, [1, 0] : vector<16x32xf32> -> vector<32x16xf32>
    %cst_49 = arith.constant dense<0.000000e+00> : vector<64x16xf32>
    %109 = tpu.matmul %107, %108, %cst_49 {dimension_numbers = #tpu.dot_dimension_numbers<[1], [0], [0], [1], [0, 0, 1, 1], [], []>} : vector<64x32xf32>, vector<32x16xf32>, vector<64x16xf32> -> vector<64x16xf32>
    %110 = arith.addf %109, %9 : vector<64x16xf32>
    %cst_50 = arith.constant dense<0xFF800000> : vector<64xf32>
    %111 = vector.multi_reduction <maximumf>, %110, %cst_50 [1] : vector<64x16xf32> to vector<64xf32>
    %112 = vector.shape_cast %111 : vector<64xf32> to vector<64x1xf32>
    %113 = vector.broadcast %112 : vector<64x1xf32> to vector<64x16xf32>
    %114 = arith.subf %110, %113 : vector<64x16xf32>
    %115 = math.exp %114 : vector<64x16xf32>
    %cst_51 = arith.constant dense<0.000000e+00> : vector<64xf32>
    %116 = vector.multi_reduction <add>, %115, %cst_51 [1] : vector<64x16xf32> to vector<64xf32>
    %117 = vector.shape_cast %116 : vector<64xf32> to vector<64x1xf32>
    %118 = tpu.reciprocal %117 {approx = true} : vector<64x1xf32> -> vector<64x1xf32>
    %119 = vector.broadcast %118 : vector<64x1xf32> to vector<64x16xf32>
    %120 = arith.mulf %115, %119 : vector<64x16xf32>
    %cst_52 = arith.constant dense<0.000000e+00> : vector<64x32xf32>
    %121 = tpu.matmul %120, %105, %cst_52 {dimension_numbers = #tpu.dot_dimension_numbers<[1], [0], [0], [1], [0, 0, 1, 1], [], []>} : vector<64x16xf32>, vector<16x32xf32>, vector<64x32xf32> -> vector<64x32xf32>
    %122 = arith.mulf %121, %8 : vector<64x32xf32>
    %123 = vector.extract_strided_slice %122 {offsets = [0, 0], sizes = [16, 32], strides = [1, 1]} : vector<64x32xf32> to vector<16x32xf32>
    %124 = vector.extract_strided_slice %122 {offsets = [16, 0], sizes = [16, 32], strides = [1, 1]} : vector<64x32xf32> to vector<16x32xf32>
    %125 = arith.addf %123, %124 : vector<16x32xf32>
    %126 = vector.extract_strided_slice %122 {offsets = [32, 0], sizes = [16, 32], strides = [1, 1]} : vector<64x32xf32> to vector<16x32xf32>
    %127 = arith.addf %125, %126 : vector<16x32xf32>
    %128 = vector.extract_strided_slice %122 {offsets = [48, 0], sizes = [16, 32], strides = [1, 1]} : vector<64x32xf32> to vector<16x32xf32>
    %129 = arith.addf %127, %128 : vector<16x32xf32>
    %130 = arith.truncf %129 : vector<16x32xf32> to vector<16x32xbf16>
    %c1_53 = arith.constant 1 : index
    %c0_54 = arith.constant 0 : index
    %c0_55 = arith.constant 0 : index
    %131 = vector.load %arg7[%c1_53, %c0_54, %c0_55] : memref<2x32x32xbf16, #tpu.memory_space<vmem>>, vector<1x32x32xbf16>
    %132 = vector.shape_cast %131 : vector<1x32x32xbf16> to vector<32x32xbf16>
    %cst_56 = arith.constant dense<0.000000e+00> : vector<16x32xf32>
    %133 = tpu.matmul %130, %132, %cst_56 {dimension_numbers = #tpu.dot_dimension_numbers<[1], [0], [0], [1], [0, 0, 1, 1], [], []>} : vector<16x32xbf16>, vector<32x32xbf16>, vector<16x32xf32> -> vector<16x32xf32>
    %134 = arith.addf %84, %133 : vector<16x32xf32>
    %c1_57 = arith.constant 1 : index
    %c0_58 = arith.constant 0 : index
    %c0_59 = arith.constant 0 : index
    %135 = vector.load %arg8[%c1_57, %c0_58, %c0_59] : memref<2x1x32xf32, #tpu.memory_space<vmem>>, vector<1x1x32xf32>
    %136 = vector.shape_cast %135 : vector<1x1x32xf32> to vector<1x32xf32>
    %137 = arith.mulf %134, %134 : vector<16x32xf32>
    %cst_60 = arith.constant dense<0.000000e+00> : vector<16xf32>
    %138 = vector.multi_reduction <add>, %137, %cst_60 [1] : vector<16x32xf32> to vector<16xf32>
    %139 = vector.shape_cast %138 : vector<16xf32> to vector<16x1xf32>
    %cst_61 = arith.constant 3.200000e+01 : f32
    %140 = vector.broadcast %cst_61 : f32 to vector<16x1xf32>
    %141 = arith.divf %139, %140 : vector<16x1xf32>
    %cst_62 = arith.constant 9.99999997E-7 : f32
    %142 = vector.broadcast %cst_62 : f32 to vector<16x1xf32>
    %143 = arith.addf %141, %142 : vector<16x1xf32>
    %144 = math.rsqrt %143 : vector<16x1xf32>
    %145 = vector.broadcast %144 : vector<16x1xf32> to vector<16x32xf32>
    %146 = arith.mulf %134, %145 : vector<16x32xf32>
    %147 = vector.broadcast %136 : vector<1x32xf32> to vector<16x32xf32>
    %148 = arith.mulf %146, %147 : vector<16x32xf32>
    %149 = arith.truncf %148 : vector<16x32xf32> to vector<16x32xbf16>
    %c1_63 = arith.constant 1 : index
    %c0_64 = arith.constant 0 : index
    %c0_65 = arith.constant 0 : index
    %150 = vector.load %arg9[%c1_63, %c0_64, %c0_65] : memref<2x32x64xbf16, #tpu.memory_space<vmem>>, vector<1x32x64xbf16>
    %151 = vector.shape_cast %150 : vector<1x32x64xbf16> to vector<32x64xbf16>
    %cst_66 = arith.constant dense<0.000000e+00> : vector<16x64xf32>
    %152 = tpu.matmul %149, %151, %cst_66 {dimension_numbers = #tpu.dot_dimension_numbers<[1], [0], [0], [1], [0, 0, 1, 1], [], []>} : vector<16x32xbf16>, vector<32x64xbf16>, vector<16x64xf32> -> vector<16x64xf32>
    %cst_67 = arith.constant 0.000000e+00 : f32
    %153 = vector.broadcast %cst_67 : f32 to vector<16x64xf32>
    %154 = arith.maximumf %152, %153 : vector<16x64xf32>
    %155 = arith.truncf %154 : vector<16x64xf32> to vector<16x64xbf16>
    %c1_68 = arith.constant 1 : index
    %c0_69 = arith.constant 0 : index
    %c0_70 = arith.constant 0 : index
    %156 = vector.load %arg10[%c1_68, %c0_69, %c0_70] : memref<2x64x32xbf16, #tpu.memory_space<vmem>>, vector<1x64x32xbf16>
    %157 = vector.shape_cast %156 : vector<1x64x32xbf16> to vector<64x32xbf16>
    %cst_71 = arith.constant dense<0.000000e+00> : vector<16x32xf32>
    %158 = tpu.matmul %155, %157, %cst_71 {dimension_numbers = #tpu.dot_dimension_numbers<[1], [0], [0], [1], [0, 0, 1, 1], [], []>} : vector<16x64xbf16>, vector<64x32xbf16>, vector<16x32xf32> -> vector<16x32xf32>
    %159 = arith.addf %134, %158 : vector<16x32xf32>
    %c0_72 = arith.constant 0 : index
    %c0_73 = arith.constant 0 : index
    %160 = vector.load %arg11[%c0_72, %c0_73] : memref<1x32xf32, #tpu.memory_space<vmem>>, vector<1x32xf32>
    %161 = arith.mulf %159, %159 : vector<16x32xf32>
    %cst_74 = arith.constant dense<0.000000e+00> : vector<16xf32>
    %162 = vector.multi_reduction <add>, %161, %cst_74 [1] : vector<16x32xf32> to vector<16xf32>
    %163 = vector.shape_cast %162 : vector<16xf32> to vector<16x1xf32>
    %cst_75 = arith.constant 3.200000e+01 : f32
    %164 = vector.broadcast %cst_75 : f32 to vector<16x1xf32>
    %165 = arith.divf %163, %164 : vector<16x1xf32>
    %cst_76 = arith.constant 9.99999997E-7 : f32
    %166 = vector.broadcast %cst_76 : f32 to vector<16x1xf32>
    %167 = arith.addf %165, %166 : vector<16x1xf32>
    %168 = math.rsqrt %167 : vector<16x1xf32>
    %169 = vector.broadcast %168 : vector<16x1xf32> to vector<16x32xf32>
    %170 = arith.mulf %159, %169 : vector<16x32xf32>
    %171 = vector.broadcast %160 : vector<1x32xf32> to vector<16x32xf32>
    %172 = arith.mulf %170, %171 : vector<16x32xf32>
    %c0_77 = arith.constant 0 : index
    %c0_78 = arith.constant 0 : index
    %173 = vector.load %arg12[%c0_77, %c0_78] : memref<16x32xf32, #tpu.memory_space<vmem>>, vector<16x32xf32>
    tpu.vector_store %arg12[%c0_77, %c0_78], %172 {strides = array<i32>} : memref<16x32xf32, #tpu.memory_space<vmem>>, vector<16x32xf32>,
    return
  }
  func.func @transform_0(%arg0: i32) -> (i32, i32) {
    %c0_i32 = arith.constant 0 : i32
    %c0_i32_0 = arith.constant 0 : i32
    %c0_i32_1 = arith.constant 0 : i32
    return %c0_i32, %c0_i32_0 : i32, i32
  }
  func.func @transform_1(%arg0: i32) -> (i32, i32) {
    %c0_i32 = arith.constant 0 : i32
    %c0_i32_0 = arith.constant 0 : i32
    %c0_i32_1 = arith.constant 0 : i32
    return %c0_i32, %c0_i32_0 : i32, i32
  }
  func.func @transform_2(%arg0: i32) -> (i32, i32) {
    %c0_i32 = arith.constant 0 : i32
    %c0_i32_0 = arith.constant 0 : i32
    %c0_i32_1 = arith.constant 0 : i32
    return %c0_i32, %c0_i32_0 : i32, i32
  }
  func.func @transform_3(%arg0: i32) -> (i32, i32) {
    %c0_i32 = arith.constant 0 : i32
    %c0_i32_0 = arith.constant 0 : i32
    %c0_i32_1 = arith.constant 0 : i32
    return %c0_i32, %c0_i32_0 : i32, i32
  }
  func.func @transform_4(%arg0: i32) -> (i32, i32, i32) {
    %c0_i32 = arith.constant 0 : i32
    %c0_i32_0 = arith.constant 0 : i32
    %c0_i32_1 = arith.constant 0 : i32
    %c0_i32_2 = arith.constant 0 : i32
    return %c0_i32, %c0_i32_0, %c0_i32_1 : i32, i32, i32
  }
  func.func @transform_5(%arg0: i32) -> (i32, i32, i32) {
    %c0_i32 = arith.constant 0 : i32
    %c0_i32_0 = arith.constant 0 : i32
    %c0_i32_1 = arith.constant 0 : i32
    %c0_i32_2 = arith.constant 0 : i32
    return %c0_i32, %c0_i32_0, %c0_i32_1 : i32, i32, i32
  }
  func.func @transform_6(%arg0: i32) -> (i32, i32, i32) {
    %c0_i32 = arith.constant 0 : i32
    %c0_i32_0 = arith.constant 0 : i32
    %c0_i32_1 = arith.constant 0 : i32
    %c0_i32_2 = arith.constant 0 : i32
    return %c0_i32, %c0_i32_0, %c0_i32_1 : i32, i32, i32
  }
  func.func @transform_7(%arg0: i32) -> (i32, i32, i32) {
    %c0_i32 = arith.constant 0 : i32
    %c0_i32_0 = arith.constant 0 : i32
    %c0_i32_1 = arith.constant 0 : i32
    %c0_i32_2 = arith.constant 0 : i32
    return %c0_i32, %c0_i32_0, %c0_i32_1 : i32, i32, i32
  }
  func.func @transform_8(%arg0: i32) -> (i32, i32, i32) {
    %c0_i32 = arith.constant 0 : i32
    %c0_i32_0 = arith.constant 0 : i32
    %c0_i32_1 = arith.constant 0 : i32
    %c0_i32_2 = arith.constant 0 : i32
    return %c0_i32, %c0_i32_0, %c0_i32_1 : i32, i32, i32
  }
  func.func @transform_9(%arg0: i32) -> (i32, i32, i32) {
    %c0_i32 = arith.constant 0 : i32
    %c0_i32_0 = arith.constant 0 : i32
    %c0_i32_1 = arith.constant 0 : i32
    %c0_i32_2 = arith.constant 0 : i32
    return %c0_i32, %c0_i32_0, %c0_i32_1 : i32, i32, i32
  }
  func.func @transform_10(%arg0: i32) -> (i32, i32) {
    %c0_i32 = arith.constant 0 : i32
    %c0_i32_0 = arith.constant 0 : i32
    %c0_i32_1 = arith.constant 0 : i32
    return %c0_i32, %c0_i32_0 : i32, i32
  }
  func.func @transform_11(%arg0: i32) -> (i32, i32) {
    %c0_i32 = arith.constant 0 : i32
    %c0_i32_0 = arith.constant 0 : i32
    %c0_i32_1 = arith.constant 0 : i32
    return %c0_i32, %c0_i32_0 : i32, i32
  }
}

</mosaic_0001>

<llo_original>
// kernel: simplified_t5_encoder.1
$region0: #{simplified_t5_encoder.1}
  #allocation0 [shape = 'u32[]', space=smem, size = 0x4, offset = 0x4, fixed_abs, tag = 'smem constant byte address 0x4 - core index']
  #allocation1 [shape = 'u32[144,128]{1,0:T(1,128)}', space=vmem, size = 0x12000, scoped, tag = 'internal scratch']
  %s0 = inlined_call_operand.vmem [shape: s32[16,1], index: 0, kind: input, shape index: {}]
  %s1 = inlined_call_operand.vmem [shape: f32[64,32], index: 1, kind: input, shape index: {}]
  %s2 = inlined_call_operand.vmem [shape: f32[64,32], index: 2, kind: input, shape index: {}]
  %s3 = inlined_call_operand.vmem [shape: f32[64,16], index: 3, kind: input, shape index: {}]
  %s4 = inlined_call_operand.vmem [shape: f32[2,1,32], index: 4, kind: input, shape index: {}]
  %s5 = inlined_call_operand.vmem [shape: bf16[2,32,96], index: 5, kind: input, shape index: {}]
  %s6 = inlined_call_operand.vmem [shape: bf16[2,32,32], index: 6, kind: input, shape index: {}]
  %s7 = inlined_call_operand.vmem [shape: f32[2,1,32], index: 7, kind: input, shape index: {}]
  %s8 = inlined_call_operand.vmem [shape: bf16[2,32,64], index: 8, kind: input, shape index: {}]
  %s9 = inlined_call_operand.vmem [shape: bf16[2,64,32], index: 9, kind: input, shape index: {}]
  %s10 = inlined_call_operand.vmem [shape: f32[1,32], index: 10, kind: input, shape index: {}]
  %s11 = inlined_call_operand.hbm [shape: f32[16,32], index: 11, kind: output, shape index: {}]
  %s12 = sld [smem:[#allocation0]]
  $region54: #{simplified_t5_encoder.1} parent=0
    _
  %s14 = ssub.s32 1, %s12
  %s15 = scalar_select 0, %s14, %s12
  $region1: #{simplified_t5_encoder.1} parent=0
    #allocation2 [shape = 'u8[8192]{0}', space=vmem, size = 0x2000, scoped, tag = 'output window, operand 0, single buffered']
    #allocation3 [shape = 's32[1]{0}', space=sflag, size = 0x4, scoped, tag = 'scoped memory for simplified_t5_encoder.1']
    %16 = vsyncpa [#allocation3], 0
    // Predicated region
    $region2: #{simplified_t5_encoder.1} parent=1 // pred_check
      _
    $region3: #{simplified_t5_encoder.1} parent=1 // pred_check_branch
      %18 = sbr.rel (0) target = $region5
    $region4: #{simplified_t5_encoder.1} parent=1 // pred_region
      _
    $region5: #{simplified_t5_encoder.1} parent=1 // pred_fallthru
      _
    // Predicated region
    $region6: #{simplified_t5_encoder.1} parent=1 // pred_check
      _
    $region7: #{simplified_t5_encoder.1} parent=1 // pred_check_branch
      %20 = sbr.rel (0) target = $region9
    $region8: #{simplified_t5_encoder.1} parent=1 // pred_region
      _
    $region9: #{simplified_t5_encoder.1} parent=1 // pred_fallthru
      _
    // Predicated region
    $region10: #{simplified_t5_encoder.1} parent=1 // pred_check
      _
    $region11: #{simplified_t5_encoder.1} parent=1 // pred_check_branch
      %22 = sbr.rel (0) target = $region13
    $region12: #{simplified_t5_encoder.1} parent=1 // pred_region
      _
    $region13: #{simplified_t5_encoder.1} parent=1 // pred_fallthru
      _
    // Predicated region
    $region14: #{simplified_t5_encoder.1} parent=1 // pred_check
      _
    $region15: #{simplified_t5_encoder.1} parent=1 // pred_check_branch
      %24 = sbr.rel (0) target = $region17
    $region16: #{simplified_t5_encoder.1} parent=1 // pred_region
      _
    $region17: #{simplified_t5_encoder.1} parent=1 // pred_fallthru
      _
    // Predicated region
    $region18: #{simplified_t5_encoder.1} parent=1 // pred_check
      _
    $region19: #{simplified_t5_encoder.1} parent=1 // pred_check_branch
      %26 = sbr.rel (0) target = $region21
    $region20: #{simplified_t5_encoder.1} parent=1 // pred_region
      _
    $region21: #{simplified_t5_encoder.1} parent=1 // pred_fallthru
      _
    // Predicated region
    $region22: #{simplified_t5_encoder.1} parent=1 // pred_check
      _
    $region23: #{simplified_t5_encoder.1} parent=1 // pred_check_branch
      %28 = sbr.rel (0) target = $region25
    $region24: #{simplified_t5_encoder.1} parent=1 // pred_region
      _
    $region25: #{simplified_t5_encoder.1} parent=1 // pred_fallthru
      _
    // Predicated region
    $region26: #{simplified_t5_encoder.1} parent=1 // pred_check
      _
    $region27: #{simplified_t5_encoder.1} parent=1 // pred_check_branch
      %30 = sbr.rel (0) target = $region29
    $region28: #{simplified_t5_encoder.1} parent=1 // pred_region
      _
    $region29: #{simplified_t5_encoder.1} parent=1 // pred_fallthru
      _
    // Predicated region
    $region30: #{simplified_t5_encoder.1} parent=1 // pred_check
      _
    $region31: #{simplified_t5_encoder.1} parent=1 // pred_check_branch
      %32 = sbr.rel (0) target = $region33
    $region32: #{simplified_t5_encoder.1} parent=1 // pred_region
      _
    $region33: #{simplified_t5_encoder.1} parent=1 // pred_fallthru
      _
    // Predicated region
    $region34: #{simplified_t5_encoder.1} parent=1 // pred_check
      _
    $region35: #{simplified_t5_encoder.1} parent=1 // pred_check_branch
      %34 = sbr.rel (0) target = $region37
    $region36: #{simplified_t5_encoder.1} parent=1 // pred_region
      _
    $region37: #{simplified_t5_encoder.1} parent=1 // pred_fallthru
      _
    // Predicated region
    $region38: #{simplified_t5_encoder.1} parent=1 // pred_check
      _
    $region39: #{simplified_t5_encoder.1} parent=1 // pred_check_branch
      %36 = sbr.rel (0) target = $region41
    $region40: #{simplified_t5_encoder.1} parent=1 // pred_region
      _
    $region41: #{simplified_t5_encoder.1} parent=1 // pred_fallthru
      _
    // Predicated region
    $region42: #{simplified_t5_encoder.1} parent=1 // pred_check
      _
    $region43: #{simplified_t5_encoder.1} parent=1 // pred_check_branch
      %38 = sbr.rel (0) target = $region45
    $region44: #{simplified_t5_encoder.1} parent=1 // pred_region
      _
    $region45: #{simplified_t5_encoder.1} parent=1 // pred_fallthru
      _
    %v40 = vld [vmem:[%s0] sm:$0xff]
    %v41 = vld [vmem:[%s0 + $0x8] sm:$0xff]
    %v42 = vlaneseq
    %v43 = vand.u32 %v42, 127
    %44 = vset.pattern.permute.xlu0 0
    %45 = vperm.xlu0 %44, %v40
    %v46 = vpop.permute.xlu0 %45
    %47 = vset.pattern.permute.xlu0 0
    %48 = vperm.xlu0 %47, %v41
    %v49 = vpop.permute.xlu0 %48
    %vm50 = vcmp.eq.s32.totalorder %v43, %v46
    %vm51 = vcmp.eq.s32.totalorder %v43, %v49
    %v52 = vsel %vm50, 1, 0
    %v53 = vsel %vm51, 1, 0
    %v54 = vcvt.s32.f32 %v52
    %v55 = vcvt.s32.f32 %v53
    %v56 = vld [vmem:[%s1] sm:$0xff]
    %v57 = vld [vmem:[%s1 + $0x8] sm:$0xff]
    %v58 = vld [vmem:[%s1 + $0x10] sm:$0xff]
    %v59 = vld [vmem:[%s1 + $0x18] sm:$0xff]
    %v60 = vld [vmem:[%s1 + $0x20] sm:$0xff]
    %v61 = vld [vmem:[%s1 + $0x28] sm:$0xff]
    %v62 = vld [vmem:[%s1 + $0x30] sm:$0xff]
    %v63 = vld [vmem:[%s1 + $0x38] sm:$0xff]
    %vm64 = vcmask 523264
    %v66 = vsel %vm64, %v54, 0
    %v69 = vsel %vm64, %v55, 0
    %71 = vmatprep.subr.mxu0 0.0
    %72 = vmatpush1.msra.mxu0 %v56
    %73 = vmatprep.subr.mxu0 0.0
    %74 = vmatpush1.msra.mxu0 %v57
    %75 = vmatprep.subr.mxu0 0.0
    %76 = vmatpush1.msra.mxu0 %v58
    %77 = vmatprep.subr.mxu0 0.0
    %78 = vmatpush1.msra.mxu0 %v59
    %79 = vmatprep.subr.mxu0 0.0
    %80 = vmatpush1.msra.mxu0 %v60
    %81 = vmatprep.subr.mxu0 0.0
    %82 = vmatpush1.msra.mxu0 %v61
    %83 = vmatprep.subr.mxu0 0.0
    %84 = vmatpush1.msra.mxu0 %v62
    %85 = vmatprep.subr.mxu0 0.0
    %86 = vmatpush1.msra.mxu0 %v63
    %87 = vmatprep.subr.mxu0 0.0
    %88 = vmatpush1.msra.mxu0 0.0
    %89 = vmatprep.subr.mxu0 0.0
    %90 = vmatpush1.msra.mxu0 0.0
    %91 = vmatprep.subr.mxu0 0.0
    %92 = vmatpush1.msra.mxu0 0.0
    %93 = vmatprep.subr.mxu0 0.0
    %94 = vmatpush1.msra.mxu0 0.0
    %95 = vmatprep.subr.mxu0 0.0
    %96 = vmatpush1.msra.mxu0 0.0
    %97 = vmatprep.subr.mxu0 0.0
    %98 = vmatpush1.msra.mxu0 0.0
    %99 = vmatprep.subr.mxu0 0.0
    %100 = vmatpush1.msra.mxu0 0.0
    %101 = vmatprep.subr.mxu0 0.0
    %102 = vmatpush1.msra.mxu0 0.0
    %103 = vmatprep.subr.mxu0 0.0
    %104 = vmatpush1.msra.mxu0 0.0
    %105 = vmatprep.subr.mxu0 0.0
    %106 = vmatpush1.msra.mxu0 0.0
    %107 = vmatprep.subr.mxu0 0.0
    %108 = vmatpush1.msra.mxu0 0.0
    %109 = vmatprep.subr.mxu0 0.0
    %110 = vmatpush1.msra.mxu0 0.0
    %111 = vmatprep.subr.mxu0 0.0
    %112 = vmatpush1.msra.mxu0 0.0
    %113 = vmatprep.subr.mxu0 0.0
    %114 = vmatpush1.msra.mxu0 0.0
    %115 = vmatprep.subr.mxu0 0.0
    %116 = vmatpush1.msra.mxu0 0.0
    %117 = vmatprep.subr.mxu0 0.0
    %118 = vmatpush1.msra.mxu0 0.0
    %119 = vmatprep.subr.mxu0 0.0
    %120 = vmatpush1.msra.mxu0 0.0
    %121 = vmatprep.subr.mxu0 0.0
    %122 = vmatpush1.msra.mxu0 0.0
    %123 = vmatprep.subr.mxu0 0.0
    %124 = vmatpush1.msra.mxu0 0.0
    %125 = vmatprep.subr.mxu0 0.0
    %126 = vmatpush1.msra.mxu0 0.0
    %127 = vmatprep.subr.mxu0 0.0
    %128 = vmatpush1.msra.mxu0 0.0
    %129 = vmatprep.subr.mxu0 0.0
    %130 = vmatpush1.msra.mxu0 0.0
    %131 = vmatprep.subr.mxu0 0.0
    %132 = vmatpush1.msra.mxu0 0.0
    %133 = vmatprep.subr.mxu0 0.0
    %134 = vmatpush1.msra.mxu0 0.0
    %135 = vmatprep.mubr.f32.mxu0 0.0
    %136 = vmatmul.mubr.f32.gmra.mrb[0].mxu0 %v66
    %v137 = vpop.f32.mrb[0].mxu0
    %v138 = vadd.f32 0.0, %v137
    %v139 = vpop.f32.mrb[0].mxu0
    %140 = vmatprep.mubr.f32.mxu0 0.0
    %141 = vmatmul.mubr.f32.gmra.mrb[0].mxu0 %v69
    %v142 = vpop.f32.mrb[0].mxu0
    %v143 = vadd.f32 0.0, %v142
    %v144 = vpop.f32.mrb[0].mxu0
    %145 = vdwg.mxu0
    %v146 = vld [vmem:[%s2] sm:$0xff]
    %v147 = vld [vmem:[%s2 + $0x8] sm:$0xff]
    %v148 = vld [vmem:[%s2 + $0x10] sm:$0xff]
    %v149 = vld [vmem:[%s2 + $0x18] sm:$0xff]
    %v150 = vld [vmem:[%s2 + $0x20] sm:$0xff]
    %v151 = vld [vmem:[%s2 + $0x28] sm:$0xff]
    %v152 = vld [vmem:[%s2 + $0x30] sm:$0xff]
    %v153 = vld [vmem:[%s2 + $0x38] sm:$0xff]
    %v154 = vld [vmem:[%s3] sm:$0xff]
    %v155 = vld [vmem:[%s3 + $0x8] sm:$0xff]
    %v156 = vld [vmem:[%s3 + $0x10] sm:$0xff]
    %v157 = vld [vmem:[%s3 + $0x18] sm:$0xff]
    %v158 = vld [vmem:[%s3 + $0x20] sm:$0xff]
    %v159 = vld [vmem:[%s3 + $0x28] sm:$0xff]
    %v160 = vld [vmem:[%s3 + $0x30] sm:$0xff]
    %v161 = vld [vmem:[%s3 + $0x38] sm:$0xff]
    %v162 = vld [vmem:[%s4] sm:$0x1]
    %v163 = vmul.f32 %v138, %v138
    %v164 = vmul.f32 %v143, %v143
    %vm165 = vcmask 261120
    %v166 = vsel %vm165, %v163, 0.0
    %167 = vadd.xlane.f32.xlu0 %v166
    %v168 = vpop.xlane.xlu0 %167
    %v169 = vsel %vm165, %v164, 0.0
    %170 = vadd.xlane.f32.xlu0 %v169
    %v171 = vpop.xlane.xlu0 %170
    %v172 = vrcp.pop 32.0
    %v173 = vmul.f32 %v168, %v172
    %v174 = vmul.f32 %v171, %v172
    %v175 = vadd.f32 %v173, 1e-06
    %v176 = vadd.f32 %v174, 1e-06
    %v177 = vrsqrt.pop %v175
    %v178 = vrsqrt.pop %v176
    %v179 = vmul.f32 %v138, %v177
    %v180 = vmul.f32 %v143, %v178
    %v182 = vlaneseq
    %v183 = vshrl.u32 %v182, 7
    %v184 = vsub.s32 0, %v183
    %v185 = vrot.slane %v162, %v184
    %v187 = vmul.f32 %v179, %v185
    %v188 = vmul.f32 %v180, %v185
    %v189 = vpack.c.bf16 %v188, %v187
    %v190 = vld [vmem:[%s5] sm:$0xf]
    %v191 = vld [vmem:[%s5 + $0x4] sm:$0xf]
    %v192 = vld [vmem:[%s5 + $0x8] sm:$0xf]
    %v193 = vld [vmem:[%s5 + $0xc] sm:$0xf]
    %v198 = vunpack.c.l.b16 %v190
    %v199 = vunpack.c.l.b16 %v191
    %v200 = vunpack.c.l.b16 %v192
    %v201 = vunpack.c.l.b16 %v193
    %v202 = vpack.c.b16 %v199, %v198
    %v203 = vpack.c.b16 %v201, %v200
    %v207 = vsel %vm165, %v189, 0
    %209 = vmatprep.subr.bf16.mxu0 0
    %210 = vmatpush1.bf16.msra.mxu0 %v202
    %211 = vmatprep.subr.bf16.mxu0 0
    %212 = vmatpush1.bf16.msra.mxu0 %v203
    %213 = vmatprep.subr.bf16.mxu0 0
    %214 = vmatpush1.bf16.msra.mxu0 0
    %215 = vmatprep.subr.bf16.mxu0 0
    %216 = vmatpush1.bf16.msra.mxu0 0
    %217 = vmatprep.subr.bf16.mxu0 0
    %218 = vmatpush1.bf16.msra.mxu0 0
    %219 = vmatprep.subr.bf16.mxu0 0
    %220 = vmatpush1.bf16.msra.mxu0 0
    %221 = vmatprep.subr.bf16.mxu0 0
    %222 = vmatpush1.bf16.msra.mxu0 0
    %223 = vmatprep.subr.bf16.mxu0 0
    %224 = vmatpush1.bf16.msra.mxu0 0
    %225 = vmatprep.subr.bf16.mxu0 0
    %226 = vmatpush1.bf16.msra.mxu0 0
    %227 = vmatprep.subr.bf16.mxu0 0
    %228 = vmatpush1.bf16.msra.mxu0 0
    %229 = vmatprep.subr.bf16.mxu0 0
    %230 = vmatpush1.bf16.msra.mxu0 0
    %231 = vmatprep.subr.bf16.mxu0 0
    %232 = vmatpush1.bf16.msra.mxu0 0
    %233 = vmatprep.subr.bf16.mxu0 0
    %234 = vmatpush1.bf16.msra.mxu0 0
    %235 = vmatprep.subr.bf16.mxu0 0
    %236 = vmatpush1.bf16.msra.mxu0 0
    %237 = vmatprep.subr.bf16.mxu0 0
    %238 = vmatpush1.bf16.msra.mxu0 0
    %239 = vmatprep.subr.bf16.mxu0 0
    %240 = vmatpush1.bf16.msra.mxu0 0
    %241 = vmatprep.mubr.bf16.mxu0 0
    %242 = vmatmul.mubr.bf16.gmra.mrb[0].mxu0 %v207
    %v243 = vpop.f32.mrb[0].mxu0
    %v244 = vadd.f32 0.0, %v243
    %v245 = vpop.f32.mrb[0].mxu0
    %v246 = vpop.f32.mrb[0].mxu0
    %v247 = vadd.f32 0.0, %v246
    %v248 = vpop.f32.mrb[0].mxu0
    %249 = vdwg.mxu0
    %v250 = vmul.f32 %v244, %v146
    %v251 = vmul.f32 %v247, %v147
    %v252 = vmul.f32 %v244, %v148
    %v253 = vmul.f32 %v247, %v149
    %v254 = vmul.f32 %v244, %v150
    %v255 = vmul.f32 %v247, %v151
    %v256 = vmul.f32 %v244, %v152
    %v257 = vmul.f32 %v247, %v153
    %260 = vrot.lane.b32.xlu0 %v244, 96
    %v261 = vpop.permute.xlu0 %260
    %262 = vrot.lane.b32.xlu0 %v247, 96
    %v263 = vpop.permute.xlu0 %262
    %v265 = vsel %vm165, %v250, 0
    %v268 = vsel %vm165, %v251, 0
    %v271 = vsel %vm165, %v252, 0
    %v274 = vsel %vm165, %v253, 0
    %v277 = vsel %vm165, %v254, 0
    %v280 = vsel %vm165, %v255, 0
    %v283 = vsel %vm165, %v256, 0
    %v286 = vsel %vm165, %v257, 0
    %v288 = vsel %vm165, %v261, 0
    %v290 = vsel %vm165, %v263, 0
    %292 = vmatprep.subr.mxu0 0.0
    %293 = vmatpush1.xpose.msra.mxu0 %v288
    %294 = vmatprep.subr.mxu0 0.0
    %295 = vmatpush1.xpose.msra.mxu0 %v290
    %296 = vmatprep.subr.mxu0 0.0
    %297 = vmatpush1.xpose.msra.mxu0 0.0
    %298 = vmatprep.subr.mxu0 0.0
    %299 = vmatpush1.xpose.msra.mxu0 0.0
    %300 = vmatprep.subr.mxu0 0.0
    %301 = vmatpush1.xpose.msra.mxu0 0.0
    %302 = vmatprep.subr.mxu0 0.0
    %303 = vmatpush1.xpose.msra.mxu0 0.0
    %304 = vmatprep.subr.mxu0 0.0
    %305 = vmatpush1.xpose.msra.mxu0 0.0
    %306 = vmatprep.subr.mxu0 0.0
    %307 = vmatpush1.xpose.msra.mxu0 0.0
    %308 = vmatprep.subr.mxu0 0.0
    %309 = vmatpush1.xpose.msra.mxu0 0.0
    %310 = vmatprep.subr.mxu0 0.0
    %311 = vmatpush1.xpose.msra.mxu0 0.0
    %312 = vmatprep.subr.mxu0 0.0
    %313 = vmatpush1.xpose.msra.mxu0 0.0
    %314 = vmatprep.subr.mxu0 0.0
    %315 = vmatpush1.xpose.msra.mxu0 0.0
    %316 = vmatprep.subr.mxu0 0.0
    %317 = vmatpush1.xpose.msra.mxu0 0.0
    %318 = vmatprep.subr.mxu0 0.0
    %319 = vmatpush1.xpose.msra.mxu0 0.0
    %320 = vmatprep.subr.mxu0 0.0
    %321 = vmatpush1.xpose.msra.mxu0 0.0
    %322 = vmatprep.subr.mxu0 0.0
    %323 = vmatpush1.xpose.msra.mxu0 0.0
    %324 = vmatprep.subr.mxu0 0.0
    %325 = vmatpush1.xpose.msra.mxu0 0.0
    %326 = vmatprep.subr.mxu0 0.0
    %327 = vmatpush1.xpose.msra.mxu0 0.0
    %328 = vmatprep.subr.mxu0 0.0
    %329 = vmatpush1.xpose.msra.mxu0 0.0
    %330 = vmatprep.subr.mxu0 0.0
    %331 = vmatpush1.xpose.msra.mxu0 0.0
    %332 = vmatprep.subr.mxu0 0.0
    %333 = vmatpush1.xpose.msra.mxu0 0.0
    %334 = vmatprep.subr.mxu0 0.0
    %335 = vmatpush1.xpose.msra.mxu0 0.0
    %336 = vmatprep.subr.mxu0 0.0
    %337 = vmatpush1.xpose.msra.mxu0 0.0
    %338 = vmatprep.subr.mxu0 0.0
    %339 = vmatpush1.xpose.msra.mxu0 0.0
    %340 = vmatprep.subr.mxu0 0.0
    %341 = vmatpush1.xpose.msra.mxu0 0.0
    %342 = vmatprep.subr.mxu0 0.0
    %343 = vmatpush1.xpose.msra.mxu0 0.0
    %344 = vmatprep.subr.mxu0 0.0
    %345 = vmatpush1.xpose.msra.mxu0 0.0
    %346 = vmatprep.subr.mxu0 0.0
    %347 = vmatpush1.xpose.msra.mxu0 0.0
    %348 = vmatprep.subr.mxu0 0.0
    %349 = vmatpush1.xpose.msra.mxu0 0.0
    %350 = vmatprep.subr.mxu0 0.0
    %351 = vmatpush1.xpose.msra.mxu0 0.0
    %352 = vmatprep.subr.mxu0 0.0
    %353 = vmatpush1.xpose.msra.mxu0 0.0
    %354 = vmatprep.subr.mxu0 0.0
    %355 = vmatpush1.xpose.msra.mxu0 0.0
    %356 = vmatprep.mubr.f32.mxu0 0.0
    %357 = vmatmul.mubr.f32.gmra.mrb[0].mxu0 %v265
    %v358 = vpop.f32.mrb[0].mxu0
    %v359 = vadd.f32 %v154, %v358
    %v360 = vpop.f32.mrb[0].mxu0
    %361 = vmatprep.mubr.f32.mxu0 0.0
    %362 = vmatmul.mubr.f32.gmra.mrb[0].mxu0 %v268
    %v363 = vpop.f32.mrb[0].mxu0
    %v364 = vadd.f32 %v155, %v363
    %v365 = vpop.f32.mrb[0].mxu0
    %366 = vmatprep.mubr.f32.mxu0 0.0
    %367 = vmatmul.mubr.f32.gmra.mrb[0].mxu0 %v271
    %v368 = vpop.f32.mrb[0].mxu0
    %v369 = vadd.f32 %v156, %v368
    %v370 = vpop.f32.mrb[0].mxu0
    %371 = vmatprep.mubr.f32.mxu0 0.0
    %372 = vmatmul.mubr.f32.gmra.mrb[0].mxu0 %v274
    %v373 = vpop.f32.mrb[0].mxu0
    %v374 = vadd.f32 %v157, %v373
    %v375 = vpop.f32.mrb[0].mxu0
    %376 = vmatprep.mubr.f32.mxu0 0.0
    %377 = vmatmul.mubr.f32.gmra.mrb[0].mxu0 %v277
    %v378 = vpop.f32.mrb[0].mxu0
    %v379 = vadd.f32 %v158, %v378
    %v380 = vpop.f32.mrb[0].mxu0
    %381 = vmatprep.mubr.f32.mxu0 0.0
    %382 = vmatmul.mubr.f32.gmra.mrb[0].mxu0 %v280
    %v383 = vpop.f32.mrb[0].mxu0
    %v384 = vadd.f32 %v159, %v383
    %v385 = vpop.f32.mrb[0].mxu0
    %386 = vmatprep.mubr.f32.mxu0 0.0
    %387 = vmatmul.mubr.f32.gmra.mrb[0].mxu0 %v283
    %v388 = vpop.f32.mrb[0].mxu0
    %v389 = vadd.f32 %v160, %v388
    %v390 = vpop.f32.mrb[0].mxu0
    %391 = vmatprep.mubr.f32.mxu0 0.0
    %392 = vmatmul.mubr.f32.gmra.mrb[0].mxu0 %v286
    %v393 = vpop.f32.mrb[0].mxu0
    %v394 = vadd.f32 %v161, %v393
    %v395 = vpop.f32.mrb[0].mxu0
    %396 = vdwg.mxu0
    %vm397 = vcmask 130048
    %v398 = vsel %vm397, %v359, -inf
    %399 = vmax.xlane.f32.xlu0 %v398
    %v400 = vpop.xlane.xlu0 %399
    %v401 = vsel %vm397, %v364, -inf
    %402 = vmax.xlane.f32.xlu0 %v401
    %v403 = vpop.xlane.xlu0 %402
    %v404 = vsel %vm397, %v369, -inf
    %405 = vmax.xlane.f32.xlu0 %v404
    %v406 = vpop.xlane.xlu0 %405
    %v407 = vsel %vm397, %v374, -inf
    %408 = vmax.xlane.f32.xlu0 %v407
    %v409 = vpop.xlane.xlu0 %408
    %v410 = vsel %vm397, %v379, -inf
    %411 = vmax.xlane.f32.xlu0 %v410
    %v412 = vpop.xlane.xlu0 %411
    %v413 = vsel %vm397, %v384, -inf
    %414 = vmax.xlane.f32.xlu0 %v413
    %v415 = vpop.xlane.xlu0 %414
    %v416 = vsel %vm397, %v389, -inf
    %417 = vmax.xlane.f32.xlu0 %v416
    %v418 = vpop.xlane.xlu0 %417
    %v419 = vsel %vm397, %v394, -inf
    %420 = vmax.xlane.f32.xlu0 %v419
    %v421 = vpop.xlane.xlu0 %420
    %v422 = vsub.f32 %v359, %v400
    %v423 = vsub.f32 %v364, %v403
    %v424 = vsub.f32 %v369, %v406
    %v425 = vsub.f32 %v374, %v409
    %v426 = vsub.f32 %v379, %v412
    %v427 = vsub.f32 %v384, %v415
    %v428 = vsub.f32 %v389, %v418
    %v429 = vsub.f32 %v394, %v421
    %v430 = vmul.f32 %v422, 1.442695
    %v431 = vpow.pop %v430
    %v432 = vmul.f32 %v423, 1.442695
    %v433 = vpow.pop %v432
    %v434 = vmul.f32 %v424, 1.442695
    %v435 = vpow.pop %v434
    %v436 = vmul.f32 %v425, 1.442695
    %v437 = vpow.pop %v436
    %v438 = vmul.f32 %v426, 1.442695
    %v439 = vpow.pop %v438
    %v440 = vmul.f32 %v427, 1.442695
    %v441 = vpow.pop %v440
    %v442 = vmul.f32 %v428, 1.442695
    %v443 = vpow.pop %v442
    %v444 = vmul.f32 %v429, 1.442695
    %v445 = vpow.pop %v444
    %v446 = vsel %vm397, %v431, 0.0
    %447 = vadd.xlane.f32.xlu0 %v446
    %v448 = vpop.xlane.xlu0 %447
    %v449 = vsel %vm397, %v433, 0.0
    %450 = vadd.xlane.f32.xlu0 %v449
    %v451 = vpop.xlane.xlu0 %450
    %v452 = vsel %vm397, %v435, 0.0
    %453 = vadd.xlane.f32.xlu0 %v452
    %v454 = vpop.xlane.xlu0 %453
    %v455 = vsel %vm397, %v437, 0.0
    %456 = vadd.xlane.f32.xlu0 %v455
    %v457 = vpop.xlane.xlu0 %456
    %v458 = vsel %vm397, %v439, 0.0
    %459 = vadd.xlane.f32.xlu0 %v458
    %v460 = vpop.xlane.xlu0 %459
    %v461 = vsel %vm397, %v441, 0.0
    %462 = vadd.xlane.f32.xlu0 %v461
    %v463 = vpop.xlane.xlu0 %462
    %v464 = vsel %vm397, %v443, 0.0
    %465 = vadd.xlane.f32.xlu0 %v464
    %v466 = vpop.xlane.xlu0 %465
    %v467 = vsel %vm397, %v445, 0.0
    %468 = vadd.xlane.f32.xlu0 %v467
    %v469 = vpop.xlane.xlu0 %468
    %v470 = vrcp.pop %v448
    %v471 = vrcp.pop %v451
    %v472 = vrcp.pop %v454
    %v473 = vrcp.pop %v457
    %v474 = vrcp.pop %v460
    %v475 = vrcp.pop %v463
    %v476 = vrcp.pop %v466
    %v477 = vrcp.pop %v469
    %v478 = vmul.f32 %v431, %v470
    %v479 = vmul.f32 %v433, %v471
    %v480 = vmul.f32 %v435, %v472
    %v481 = vmul.f32 %v437, %v473
    %v482 = vmul.f32 %v439, %v474
    %v483 = vmul.f32 %v441, %v475
    %v484 = vmul.f32 %v443, %v476
    %v485 = vmul.f32 %v445, %v477
    %486 = vrot.lane.b32.xlu0 %v244, 64
    %v487 = vpop.permute.xlu0 %486
    %488 = vrot.lane.b32.xlu0 %v247, 64
    %v489 = vpop.permute.xlu0 %488
    %v493 = vsel %vm397, %v478, 0
    %v496 = vsel %vm397, %v479, 0
    %v499 = vsel %vm397, %v480, 0
    %v502 = vsel %vm397, %v481, 0
    %v505 = vsel %vm397, %v482, 0
    %v508 = vsel %vm397, %v483, 0
    %v511 = vsel %vm397, %v484, 0
    %v514 = vsel %vm397, %v485, 0
    %516 = vmatprep.subr.mxu0 0.0
    %517 = vmatpush1.msra.mxu0 %v487
    %518 = vmatprep.subr.mxu0 0.0
    %519 = vmatpush1.msra.mxu0 %v489
    %520 = vmatprep.subr.mxu0 0.0
    %521 = vmatpush1.msra.mxu0 0.0
    %522 = vmatprep.subr.mxu0 0.0
    %523 = vmatpush1.msra.mxu0 0.0
    %524 = vmatprep.subr.mxu0 0.0
    %525 = vmatpush1.msra.mxu0 0.0
    %526 = vmatprep.subr.mxu0 0.0
    %527 = vmatpush1.msra.mxu0 0.0
    %528 = vmatprep.subr.mxu0 0.0
    %529 = vmatpush1.msra.mxu0 0.0
    %530 = vmatprep.subr.mxu0 0.0
    %531 = vmatpush1.msra.mxu0 0.0
    %532 = vmatprep.subr.mxu0 0.0
    %533 = vmatpush1.msra.mxu0 0.0
    %534 = vmatprep.subr.mxu0 0.0
    %535 = vmatpush1.msra.mxu0 0.0
    %536 = vmatprep.subr.mxu0 0.0
    %537 = vmatpush1.msra.mxu0 0.0
    %538 = vmatprep.subr.mxu0 0.0
    %539 = vmatpush1.msra.mxu0 0.0
    %540 = vmatprep.subr.mxu0 0.0
    %541 = vmatpush1.msra.mxu0 0.0
    %542 = vmatprep.subr.mxu0 0.0
    %543 = vmatpush1.msra.mxu0 0.0
    %544 = vmatprep.subr.mxu0 0.0
    %545 = vmatpush1.msra.mxu0 0.0
    %546 = vmatprep.subr.mxu0 0.0
    %547 = vmatpush1.msra.mxu0 0.0
    %548 = vmatprep.subr.mxu0 0.0
    %549 = vmatpush1.msra.mxu0 0.0
    %550 = vmatprep.subr.mxu0 0.0
    %551 = vmatpush1.msra.mxu0 0.0
    %552 = vmatprep.subr.mxu0 0.0
    %553 = vmatpush1.msra.mxu0 0.0
    %554 = vmatprep.subr.mxu0 0.0
    %555 = vmatpush1.msra.mxu0 0.0
    %556 = vmatprep.subr.mxu0 0.0
    %557 = vmatpush1.msra.mxu0 0.0
    %558 = vmatprep.subr.mxu0 0.0
    %559 = vmatpush1.msra.mxu0 0.0
    %560 = vmatprep.subr.mxu0 0.0
    %561 = vmatpush1.msra.mxu0 0.0
    %562 = vmatprep.subr.mxu0 0.0
    %563 = vmatpush1.msra.mxu0 0.0
    %564 = vmatprep.subr.mxu0 0.0
    %565 = vmatpush1.msra.mxu0 0.0
    %566 = vmatprep.subr.mxu0 0.0
    %567 = vmatpush1.msra.mxu0 0.0
    %568 = vmatprep.subr.mxu0 0.0
    %569 = vmatpush1.msra.mxu0 0.0
    %570 = vmatprep.subr.mxu0 0.0
    %571 = vmatpush1.msra.mxu0 0.0
    %572 = vmatprep.subr.mxu0 0.0
    %573 = vmatpush1.msra.mxu0 0.0
    %574 = vmatprep.subr.mxu0 0.0
    %575 = vmatpush1.msra.mxu0 0.0
    %576 = vmatprep.subr.mxu0 0.0
    %577 = vmatpush1.msra.mxu0 0.0
    %578 = vmatprep.subr.mxu0 0.0
    %579 = vmatpush1.msra.mxu0 0.0
    %580 = vmatprep.mubr.f32.mxu0 0.0
    %581 = vmatmul.mubr.f32.gmra.mrb[0].mxu0 %v493
    %v582 = vpop.f32.mrb[0].mxu0
    %v583 = vadd.f32 0.0, %v582
    %v584 = vpop.f32.mrb[0].mxu0
    %585 = vmatprep.mubr.f32.mxu0 0.0
    %586 = vmatmul.mubr.f32.gmra.mrb[0].mxu0 %v496
    %v587 = vpop.f32.mrb[0].mxu0
    %v588 = vadd.f32 0.0, %v587
    %v589 = vpop.f32.mrb[0].mxu0
    %590 = vmatprep.mubr.f32.mxu0 0.0
    %591 = vmatmul.mubr.f32.gmra.mrb[0].mxu0 %v499
    %v592 = vpop.f32.mrb[0].mxu0
    %v593 = vadd.f32 0.0, %v592
    %v594 = vpop.f32.mrb[0].mxu0
    %595 = vmatprep.mubr.f32.mxu0 0.0
    %596 = vmatmul.mubr.f32.gmra.mrb[0].mxu0 %v502
    %v597 = vpop.f32.mrb[0].mxu0
    %v598 = vadd.f32 0.0, %v597
    %v599 = vpop.f32.mrb[0].mxu0
    %600 = vmatprep.mubr.f32.mxu0 0.0
    %601 = vmatmul.mubr.f32.gmra.mrb[0].mxu0 %v505
    %v602 = vpop.f32.mrb[0].mxu0
    %v603 = vadd.f32 0.0, %v602
    %v604 = vpop.f32.mrb[0].mxu0
    %605 = vmatprep.mubr.f32.mxu0 0.0
    %606 = vmatmul.mubr.f32.gmra.mrb[0].mxu0 %v508
    %v607 = vpop.f32.mrb[0].mxu0
    %v608 = vadd.f32 0.0, %v607
    %v609 = vpop.f32.mrb[0].mxu0
    %610 = vmatprep.mubr.f32.mxu0 0.0
    %611 = vmatmul.mubr.f32.gmra.mrb[0].mxu0 %v511
    %v612 = vpop.f32.mrb[0].mxu0
    %v613 = vadd.f32 0.0, %v612
    %v614 = vpop.f32.mrb[0].mxu0
    %615 = vmatprep.mubr.f32.mxu0 0.0
    %616 = vmatmul.mubr.f32.gmra.mrb[0].mxu0 %v514
    %v617 = vpop.f32.mrb[0].mxu0
    %v618 = vadd.f32 0.0, %v617
    %v619 = vpop.f32.mrb[0].mxu0
    %620 = vdwg.mxu0
    %v621 = vmul.f32 %v583, %v146
    %v622 = vmul.f32 %v588, %v147
    %v623 = vmul.f32 %v593, %v148
    %v624 = vmul.f32 %v598, %v149
    %v625 = vmul.f32 %v603, %v150
    %v626 = vmul.f32 %v608, %v151
    %v627 = vmul.f32 %v613, %v152
    %v628 = vmul.f32 %v618, %v153
    %v629 = vadd.f32 %v621, %v623
    %v630 = vadd.f32 %v622, %v624
    %v631 = vadd.f32 %v629, %v625
    %v632 = vadd.f32 %v630, %v626
    %v633 = vadd.f32 %v631, %v627
    %v634 = vadd.f32 %v632, %v628
    %v635 = vpack.c.bf16 %v634, %v633
    %v636 = vld [vmem:[%s6] sm:$0xf]
    %v637 = vld [vmem:[%s6 + $0x4] sm:$0xf]
    %v638 = vld [vmem:[%s6 + $0x8] sm:$0xf]
    %v639 = vld [vmem:[%s6 + $0xc] sm:$0xf]
    %v644 = vunpack.c.l.b16 %v636
    %v645 = vunpack.c.l.b16 %v637
    %v646 = vunpack.c.l.b16 %v638
    %v647 = vunpack.c.l.b16 %v639
    %v648 = vpack.c.b16 %v645, %v644
    %v649 = vpack.c.b16 %v647, %v646
    %v653 = vsel %vm165, %v635, 0
    %655 = vmatprep.subr.bf16.mxu0 0
    %656 = vmatpush1.bf16.msra.mxu0 %v648
    %657 = vmatprep.subr.bf16.mxu0 0
    %658 = vmatpush1.bf16.msra.mxu0 %v649
    %659 = vmatprep.subr.bf16.mxu0 0
    %660 = vmatpush1.bf16.msra.mxu0 0
    %661 = vmatprep.subr.bf16.mxu0 0
    %662 = vmatpush1.bf16.msra.mxu0 0
    %663 = vmatprep.subr.bf16.mxu0 0
    %664 = vmatpush1.bf16.msra.mxu0 0
    %665 = vmatprep.subr.bf16.mxu0 0
    %666 = vmatpush1.bf16.msra.mxu0 0
    %667 = vmatprep.subr.bf16.mxu0 0
    %668 = vmatpush1.bf16.msra.mxu0 0
    %669 = vmatprep.subr.bf16.mxu0 0
    %670 = vmatpush1.bf16.msra.mxu0 0
    %671 = vmatprep.subr.bf16.mxu0 0
    %672 = vmatpush1.bf16.msra.mxu0 0
    %673 = vmatprep.subr.bf16.mxu0 0
    %674 = vmatpush1.bf16.msra.mxu0 0
    %675 = vmatprep.subr.bf16.mxu0 0
    %676 = vmatpush1.bf16.msra.mxu0 0
    %677 = vmatprep.subr.bf16.mxu0 0
    %678 = vmatpush1.bf16.msra.mxu0 0
    %679 = vmatprep.subr.bf16.mxu0 0
    %680 = vmatpush1.bf16.msra.mxu0 0
    %681 = vmatprep.subr.bf16.mxu0 0
    %682 = vmatpush1.bf16.msra.mxu0 0
    %683 = vmatprep.subr.bf16.mxu0 0
    %684 = vmatpush1.bf16.msra.mxu0 0
    %685 = vmatprep.subr.bf16.mxu0 0
    %686 = vmatpush1.bf16.msra.mxu0 0
    %687 = vmatprep.mubr.bf16.mxu0 0
    %688 = vmatmul.mubr.bf16.gmra.mrb[0].mxu0 %v653
    %v689 = vpop.f32.mrb[0].mxu0
    %v690 = vadd.f32 0.0, %v689
    %v691 = vpop.f32.mrb[0].mxu0
    %v692 = vpop.f32.mrb[0].mxu0
    %v693 = vadd.f32 0.0, %v692
    %v694 = vpop.f32.mrb[0].mxu0
    %695 = vdwg.mxu0
    %v696 = vadd.f32 %v138, %v690
    %v697 = vadd.f32 %v143, %v693
    %v698 = vld [vmem:[%s7] sm:$0x1]
    %v699 = vmul.f32 %v696, %v696
    %v700 = vmul.f32 %v697, %v697
    %v701 = vsel %vm165, %v699, 0.0
    %702 = vadd.xlane.f32.xlu0 %v701
    %v703 = vpop.xlane.xlu0 %702
    %v704 = vsel %vm165, %v700, 0.0
    %705 = vadd.xlane.f32.xlu0 %v704
    %v706 = vpop.xlane.xlu0 %705
    %v707 = vmul.f32 %v703, %v172
    %v708 = vmul.f32 %v706, %v172
    %v709 = vadd.f32 %v707, 1e-06
    %v710 = vadd.f32 %v708, 1e-06
    %v711 = vrsqrt.pop %v709
    %v712 = vrsqrt.pop %v710
    %v713 = vmul.f32 %v696, %v711
    %v714 = vmul.f32 %v697, %v712
    %v716 = vlaneseq
    %v717 = vshrl.u32 %v716, 7
    %v718 = vsub.s32 0, %v717
    %v719 = vrot.slane %v698, %v718
    %v721 = vmul.f32 %v713, %v719
    %v722 = vmul.f32 %v714, %v719
    %v723 = vpack.c.bf16 %v722, %v721
    %v724 = vld [vmem:[%s8] sm:$0xf]
    %v725 = vld [vmem:[%s8 + $0x4] sm:$0xf]
    %v726 = vld [vmem:[%s8 + $0x8] sm:$0xf]
    %v727 = vld [vmem:[%s8 + $0xc] sm:$0xf]
    %v732 = vunpack.c.l.b16 %v724
    %v733 = vunpack.c.l.b16 %v725
    %v734 = vunpack.c.l.b16 %v726
    %v735 = vunpack.c.l.b16 %v727
    %v736 = vpack.c.b16 %v733, %v732
    %v737 = vpack.c.b16 %v735, %v734
    %v741 = vsel %vm165, %v723, 0
    %743 = vmatprep.subr.bf16.mxu0 0
    %744 = vmatpush1.bf16.msra.mxu0 %v736
    %745 = vmatprep.subr.bf16.mxu0 0
    %746 = vmatpush1.bf16.msra.mxu0 %v737
    %747 = vmatprep.subr.bf16.mxu0 0
    %748 = vmatpush1.bf16.msra.mxu0 0
    %749 = vmatprep.subr.bf16.mxu0 0
    %750 = vmatpush1.bf16.msra.mxu0 0
    %751 = vmatprep.subr.bf16.mxu0 0
    %752 = vmatpush1.bf16.msra.mxu0 0
    %753 = vmatprep.subr.bf16.mxu0 0
    %754 = vmatpush1.bf16.msra.mxu0 0
    %755 = vmatprep.subr.bf16.mxu0 0
    %756 = vmatpush1.bf16.msra.mxu0 0
    %757 = vmatprep.subr.bf16.mxu0 0
    %758 = vmatpush1.bf16.msra.mxu0 0
    %759 = vmatprep.subr.bf16.mxu0 0
    %760 = vmatpush1.bf16.msra.mxu0 0
    %761 = vmatprep.subr.bf16.mxu0 0
    %762 = vmatpush1.bf16.msra.mxu0 0
    %763 = vmatprep.subr.bf16.mxu0 0
    %764 = vmatpush1.bf16.msra.mxu0 0
    %765 = vmatprep.subr.bf16.mxu0 0
    %766 = vmatpush1.bf16.msra.mxu0 0
    %767 = vmatprep.subr.bf16.mxu0 0
    %768 = vmatpush1.bf16.msra.mxu0 0
    %769 = vmatprep.subr.bf16.mxu0 0
    %770 = vmatpush1.bf16.msra.mxu0 0
    %771 = vmatprep.subr.bf16.mxu0 0
    %772 = vmatpush1.bf16.msra.mxu0 0
    %773 = vmatprep.subr.bf16.mxu0 0
    %774 = vmatpush1.bf16.msra.mxu0 0
    %775 = vmatprep.mubr.bf16.mxu0 0
    %776 = vmatmul.mubr.bf16.gmra.mrb[0].mxu0 %v741
    %v777 = vpop.f32.mrb[0].mxu0
    %v778 = vadd.f32 0.0, %v777
    %v779 = vpop.f32.mrb[0].mxu0
    %v780 = vpop.f32.mrb[0].mxu0
    %v781 = vadd.f32 0.0, %v780
    %v782 = vpop.f32.mrb[0].mxu0
    %783 = vdwg.mxu0
    %v784 = vmax.f32 %v778, 0.0
    %v785 = vmax.f32 %v781, 0.0
    %v786 = vpack.c.bf16 %v785, %v784
    %v787 = vld [vmem:[%s9] sm:$0xf]
    %v788 = vld [vmem:[%s9 + $0x4] sm:$0xf]
    %v789 = vld [vmem:[%s9 + $0x8] sm:$0xf]
    %v790 = vld [vmem:[%s9 + $0xc] sm:$0xf]
    %v791 = vld [vmem:[%s9 + $0x10] sm:$0xf]
    %v792 = vld [vmem:[%s9 + $0x14] sm:$0xf]
    %v793 = vld [vmem:[%s9 + $0x18] sm:$0xf]
    %v794 = vld [vmem:[%s9 + $0x1c] sm:$0xf]
    %v803 = vunpack.c.l.b16 %v787
    %v804 = vunpack.c.l.b16 %v788
    %v805 = vunpack.c.l.b16 %v789
    %v806 = vunpack.c.l.b16 %v790
    %v807 = vunpack.c.l.b16 %v791
    %v808 = vunpack.c.l.b16 %v792
    %v809 = vunpack.c.l.b16 %v793
    %v810 = vunpack.c.l.b16 %v794
    %v811 = vpack.c.b16 %v804, %v803
    %v812 = vpack.c.b16 %v806, %v805
    %v813 = vpack.c.b16 %v808, %v807
    %v814 = vpack.c.b16 %v810, %v809
    %v820 = vsel %vm64, %v786, 0
    %822 = vmatprep.subr.bf16.mxu0 0
    %823 = vmatpush1.bf16.msra.mxu0 %v811
    %824 = vmatprep.subr.bf16.mxu0 0
    %825 = vmatpush1.bf16.msra.mxu0 %v812
    %826 = vmatprep.subr.bf16.mxu0 0
    %827 = vmatpush1.bf16.msra.mxu0 %v813
    %828 = vmatprep.subr.bf16.mxu0 0
    %829 = vmatpush1.bf16.msra.mxu0 %v814
    %830 = vmatprep.subr.bf16.mxu0 0
    %831 = vmatpush1.bf16.msra.mxu0 0
    %832 = vmatprep.subr.bf16.mxu0 0
    %833 = vmatpush1.bf16.msra.mxu0 0
    %834 = vmatprep.subr.bf16.mxu0 0
    %835 = vmatpush1.bf16.msra.mxu0 0
    %836 = vmatprep.subr.bf16.mxu0 0
    %837 = vmatpush1.bf16.msra.mxu0 0
    %838 = vmatprep.subr.bf16.mxu0 0
    %839 = vmatpush1.bf16.msra.mxu0 0
    %840 = vmatprep.subr.bf16.mxu0 0
    %841 = vmatpush1.bf16.msra.mxu0 0
    %842 = vmatprep.subr.bf16.mxu0 0
    %843 = vmatpush1.bf16.msra.mxu0 0
    %844 = vmatprep.subr.bf16.mxu0 0
    %845 = vmatpush1.bf16.msra.mxu0 0
    %846 = vmatprep.subr.bf16.mxu0 0
    %847 = vmatpush1.bf16.msra.mxu0 0
    %848 = vmatprep.subr.bf16.mxu0 0
    %849 = vmatpush1.bf16.msra.mxu0 0
    %850 = vmatprep.subr.bf16.mxu0 0
    %851 = vmatpush1.bf16.msra.mxu0 0
    %852 = vmatprep.subr.bf16.mxu0 0
    %853 = vmatpush1.bf16.msra.mxu0 0
    %854 = vmatprep.mubr.bf16.mxu0 0
    %855 = vmatmul.mubr.bf16.gmra.mrb[0].mxu0 %v820
    %v856 = vpop.f32.mrb[0].mxu0
    %v857 = vadd.f32 0.0, %v856
    %v858 = vpop.f32.mrb[0].mxu0
    %v859 = vpop.f32.mrb[0].mxu0
    %v860 = vadd.f32 0.0, %v859
    %v861 = vpop.f32.mrb[0].mxu0
    %862 = vdwg.mxu0
    %v863 = vadd.f32 %v696, %v857
    %v864 = vadd.f32 %v697, %v860
    %s865 = scalar_lea.vmem %s4, 1
    %v866 = vld [vmem:[%s865] sm:$0x1]
    %v867 = vmul.f32 %v863, %v863
    %v868 = vmul.f32 %v864, %v864
    %v869 = vsel %vm165, %v867, 0.0
    %870 = vadd.xlane.f32.xlu0 %v869
    %v871 = vpop.xlane.xlu0 %870
    %v872 = vsel %vm165, %v868, 0.0
    %873 = vadd.xlane.f32.xlu0 %v872
    %v874 = vpop.xlane.xlu0 %873
    %v875 = vmul.f32 %v871, %v172
    %v876 = vmul.f32 %v874, %v172
    %v877 = vadd.f32 %v875, 1e-06
    %v878 = vadd.f32 %v876, 1e-06
    %v879 = vrsqrt.pop %v877
    %v880 = vrsqrt.pop %v878
    %v881 = vmul.f32 %v863, %v879
    %v882 = vmul.f32 %v864, %v880
    %v884 = vlaneseq
    %v885 = vshrl.u32 %v884, 7
    %v886 = vsub.s32 0, %v885
    %v887 = vrot.slane %v866, %v886
    %v889 = vmul.f32 %v881, %v887
    %v890 = vmul.f32 %v882, %v887
    %v891 = vpack.c.bf16 %v890, %v889
    %s892 = scalar_lea.vmem %s5, 16
    %v893 = vld [vmem:[%s892] sm:$0xf]
    %v894 = vld [vmem:[%s892 + $0x4] sm:$0xf]
    %v895 = vld [vmem:[%s892 + $0x8] sm:$0xf]
    %v896 = vld [vmem:[%s892 + $0xc] sm:$0xf]
    %v901 = vunpack.c.l.b16 %v893
    %v902 = vunpack.c.l.b16 %v894
    %v903 = vunpack.c.l.b16 %v895
    %v904 = vunpack.c.l.b16 %v896
    %v905 = vpack.c.b16 %v902, %v901
    %v906 = vpack.c.b16 %v904, %v903
    %v910 = vsel %vm165, %v891, 0
    %912 = vmatprep.subr.bf16.mxu0 0
    %913 = vmatpush1.bf16.msra.mxu0 %v905
    %914 = vmatprep.subr.bf16.mxu0 0
    %915 = vmatpush1.bf16.msra.mxu0 %v906
    %916 = vmatprep.subr.bf16.mxu0 0
    %917 = vmatpush1.bf16.msra.mxu0 0
    %918 = vmatprep.subr.bf16.mxu0 0
    %919 = vmatpush1.bf16.msra.mxu0 0
    %920 = vmatprep.subr.bf16.mxu0 0
    %921 = vmatpush1.bf16.msra.mxu0 0
    %922 = vmatprep.subr.bf16.mxu0 0
    %923 = vmatpush1.bf16.msra.mxu0 0
    %924 = vmatprep.subr.bf16.mxu0 0
    %925 = vmatpush1.bf16.msra.mxu0 0
    %926 = vmatprep.subr.bf16.mxu0 0
    %927 = vmatpush1.bf16.msra.mxu0 0
    %928 = vmatprep.subr.bf16.mxu0 0
    %929 = vmatpush1.bf16.msra.mxu0 0
    %930 = vmatprep.subr.bf16.mxu0 0
    %931 = vmatpush1.bf16.msra.mxu0 0
    %932 = vmatprep.subr.bf16.mxu0 0
    %933 = vmatpush1.bf16.msra.mxu0 0
    %934 = vmatprep.subr.bf16.mxu0 0
    %935 = vmatpush1.bf16.msra.mxu0 0
    %936 = vmatprep.subr.bf16.mxu0 0
    %937 = vmatpush1.bf16.msra.mxu0 0
    %938 = vmatprep.subr.bf16.mxu0 0
    %939 = vmatpush1.bf16.msra.mxu0 0
    %940 = vmatprep.subr.bf16.mxu0 0
    %941 = vmatpush1.bf16.msra.mxu0 0
    %942 = vmatprep.subr.bf16.mxu0 0
    %943 = vmatpush1.bf16.msra.mxu0 0
    %944 = vmatprep.mubr.bf16.mxu0 0
    %945 = vmatmul.mubr.bf16.gmra.mrb[0].mxu0 %v910
    %v946 = vpop.f32.mrb[0].mxu0
    %v947 = vadd.f32 0.0, %v946
    %v948 = vpop.f32.mrb[0].mxu0
    %v949 = vpop.f32.mrb[0].mxu0
    %v950 = vadd.f32 0.0, %v949
    %v951 = vpop.f32.mrb[0].mxu0
    %952 = vdwg.mxu0
    %v953 = vmul.f32 %v947, %v146
    %v954 = vmul.f32 %v950, %v147
    %v955 = vmul.f32 %v947, %v148
    %v956 = vmul.f32 %v950, %v149
    %v957 = vmul.f32 %v947, %v150
    %v958 = vmul.f32 %v950, %v151
    %v959 = vmul.f32 %v947, %v152
    %v960 = vmul.f32 %v950, %v153
    %963 = vrot.lane.b32.xlu0 %v947, 96
    %v964 = vpop.permute.xlu0 %963
    %965 = vrot.lane.b32.xlu0 %v950, 96
    %v966 = vpop.permute.xlu0 %965
    %v968 = vsel %vm165, %v953, 0
    %v971 = vsel %vm165, %v954, 0
    %v974 = vsel %vm165, %v955, 0
    %v977 = vsel %vm165, %v956, 0
    %v980 = vsel %vm165, %v957, 0
    %v983 = vsel %vm165, %v958, 0
    %v986 = vsel %vm165, %v959, 0
    %v989 = vsel %vm165, %v960, 0
    %v991 = vsel %vm165, %v964, 0
    %v993 = vsel %vm165, %v966, 0
    %995 = vmatprep.subr.mxu0 0.0
    %996 = vmatpush1.xpose.msra.mxu0 %v991
    %997 = vmatprep.subr.mxu0 0.0
    %998 = vmatpush1.xpose.msra.mxu0 %v993
    %999 = vmatprep.subr.mxu0 0.0
    %1000 = vmatpush1.xpose.msra.mxu0 0.0
    %1001 = vmatprep.subr.mxu0 0.0
    %1002 = vmatpush1.xpose.msra.mxu0 0.0
    %1003 = vmatprep.subr.mxu0 0.0
    %1004 = vmatpush1.xpose.msra.mxu0 0.0
    %1005 = vmatprep.subr.mxu0 0.0
    %1006 = vmatpush1.xpose.msra.mxu0 0.0
    %1007 = vmatprep.subr.mxu0 0.0
    %1008 = vmatpush1.xpose.msra.mxu0 0.0
    %1009 = vmatprep.subr.mxu0 0.0
    %1010 = vmatpush1.xpose.msra.mxu0 0.0
    %1011 = vmatprep.subr.mxu0 0.0
    %1012 = vmatpush1.xpose.msra.mxu0 0.0
    %1013 = vmatprep.subr.mxu0 0.0
    %1014 = vmatpush1.xpose.msra.mxu0 0.0
    %1015 = vmatprep.subr.mxu0 0.0
    %1016 = vmatpush1.xpose.msra.mxu0 0.0
    %1017 = vmatprep.subr.mxu0 0.0
    %1018 = vmatpush1.xpose.msra.mxu0 0.0
    %1019 = vmatprep.subr.mxu0 0.0
    %1020 = vmatpush1.xpose.msra.mxu0 0.0
    %1021 = vmatprep.subr.mxu0 0.0
    %1022 = vmatpush1.xpose.msra.mxu0 0.0
    %1023 = vmatprep.subr.mxu0 0.0
    %1024 = vmatpush1.xpose.msra.mxu0 0.0
    %1025 = vmatprep.subr.mxu0 0.0
    %1026 = vmatpush1.xpose.msra.mxu0 0.0
    %1027 = vmatprep.subr.mxu0 0.0
    %1028 = vmatpush1.xpose.msra.mxu0 0.0
    %1029 = vmatprep.subr.mxu0 0.0
    %1030 = vmatpush1.xpose.msra.mxu0 0.0
    %1031 = vmatprep.subr.mxu0 0.0
    %1032 = vmatpush1.xpose.msra.mxu0 0.0
    %1033 = vmatprep.subr.mxu0 0.0
    %1034 = vmatpush1.xpose.msra.mxu0 0.0
    %1035 = vmatprep.subr.mxu0 0.0
    %1036 = vmatpush1.xpose.msra.mxu0 0.0
    %1037 = vmatprep.subr.mxu0 0.0
    %1038 = vmatpush1.xpose.msra.mxu0 0.0
    %1039 = vmatprep.subr.mxu0 0.0
    %1040 = vmatpush1.xpose.msra.mxu0 0.0
    %1041 = vmatprep.subr.mxu0 0.0
    %1042 = vmatpush1.xpose.msra.mxu0 0.0
    %1043 = vmatprep.subr.mxu0 0.0
    %1044 = vmatpush1.xpose.msra.mxu0 0.0
    %1045 = vmatprep.subr.mxu0 0.0
    %1046 = vmatpush1.xpose.msra.mxu0 0.0
    %1047 = vmatprep.subr.mxu0 0.0
    %1048 = vmatpush1.xpose.msra.mxu0 0.0
    %1049 = vmatprep.subr.mxu0 0.0
    %1050 = vmatpush1.xpose.msra.mxu0 0.0
    %1051 = vmatprep.subr.mxu0 0.0
    %1052 = vmatpush1.xpose.msra.mxu0 0.0
    %1053 = vmatprep.subr.mxu0 0.0
    %1054 = vmatpush1.xpose.msra.mxu0 0.0
    %1055 = vmatprep.subr.mxu0 0.0
    %1056 = vmatpush1.xpose.msra.mxu0 0.0
    %1057 = vmatprep.subr.mxu0 0.0
    %1058 = vmatpush1.xpose.msra.mxu0 0.0
    %1059 = vmatprep.mubr.f32.mxu0 0.0
    %1060 = vmatmul.mubr.f32.gmra.mrb[0].mxu0 %v968
    %v1061 = vpop.f32.mrb[0].mxu0
    %v1062 = vadd.f32 %v154, %v1061
    %v1063 = vpop.f32.mrb[0].mxu0
    %1064 = vmatprep.mubr.f32.mxu0 0.0
    %1065 = vmatmul.mubr.f32.gmra.mrb[0].mxu0 %v971
    %v1066 = vpop.f32.mrb[0].mxu0
    %v1067 = vadd.f32 %v155, %v1066
    %v1068 = vpop.f32.mrb[0].mxu0
    %1069 = vmatprep.mubr.f32.mxu0 0.0
    %1070 = vmatmul.mubr.f32.gmra.mrb[0].mxu0 %v974
    %v1071 = vpop.f32.mrb[0].mxu0
    %v1072 = vadd.f32 %v156, %v1071
    %v1073 = vpop.f32.mrb[0].mxu0
    %1074 = vmatprep.mubr.f32.mxu0 0.0
    %1075 = vmatmul.mubr.f32.gmra.mrb[0].mxu0 %v977
    %v1076 = vpop.f32.mrb[0].mxu0
    %v1077 = vadd.f32 %v157, %v1076
    %v1078 = vpop.f32.mrb[0].mxu0
    %1079 = vmatprep.mubr.f32.mxu0 0.0
    %1080 = vmatmul.mubr.f32.gmra.mrb[0].mxu0 %v980
    %v1081 = vpop.f32.mrb[0].mxu0
    %v1082 = vadd.f32 %v158, %v1081
    %v1083 = vpop.f32.mrb[0].mxu0
    %1084 = vmatprep.mubr.f32.mxu0 0.0
    %1085 = vmatmul.mubr.f32.gmra.mrb[0].mxu0 %v983
    %v1086 = vpop.f32.mrb[0].mxu0
    %v1087 = vadd.f32 %v159, %v1086
    %v1088 = vpop.f32.mrb[0].mxu0
    %1089 = vmatprep.mubr.f32.mxu0 0.0
    %1090 = vmatmul.mubr.f32.gmra.mrb[0].mxu0 %v986
    %v1091 = vpop.f32.mrb[0].mxu0
    %v1092 = vadd.f32 %v160, %v1091
    %v1093 = vpop.f32.mrb[0].mxu0
    %1094 = vmatprep.mubr.f32.mxu0 0.0
    %1095 = vmatmul.mubr.f32.gmra.mrb[0].mxu0 %v989
    %v1096 = vpop.f32.mrb[0].mxu0
    %v1097 = vadd.f32 %v161, %v1096
    %v1098 = vpop.f32.mrb[0].mxu0
    %1099 = vdwg.mxu0
    %v1100 = vsel %vm397, %v1062, -inf
    %1101 = vmax.xlane.f32.xlu0 %v1100
    %v1102 = vpop.xlane.xlu0 %1101
    %v1103 = vsel %vm397, %v1067, -inf
    %1104 = vmax.xlane.f32.xlu0 %v1103
    %v1105 = vpop.xlane.xlu0 %1104
    %v1106 = vsel %vm397, %v1072, -inf
    %1107 = vmax.xlane.f32.xlu0 %v1106
    %v1108 = vpop.xlane.xlu0 %1107
    %v1109 = vsel %vm397, %v1077, -inf
    %1110 = vmax.xlane.f32.xlu0 %v1109
    %v1111 = vpop.xlane.xlu0 %1110
    %v1112 = vsel %vm397, %v1082, -inf
    %1113 = vmax.xlane.f32.xlu0 %v1112
    %v1114 = vpop.xlane.xlu0 %1113
    %v1115 = vsel %vm397, %v1087, -inf
    %1116 = vmax.xlane.f32.xlu0 %v1115
    %v1117 = vpop.xlane.xlu0 %1116
    %v1118 = vsel %vm397, %v1092, -inf
    %1119 = vmax.xlane.f32.xlu0 %v1118
    %v1120 = vpop.xlane.xlu0 %1119
    %v1121 = vsel %vm397, %v1097, -inf
    %1122 = vmax.xlane.f32.xlu0 %v1121
    %v1123 = vpop.xlane.xlu0 %1122
    %v1124 = vsub.f32 %v1062, %v1102
    %v1125 = vsub.f32 %v1067, %v1105
    %v1126 = vsub.f32 %v1072, %v1108
    %v1127 = vsub.f32 %v1077, %v1111
    %v1128 = vsub.f32 %v1082, %v1114
    %v1129 = vsub.f32 %v1087, %v1117
    %v1130 = vsub.f32 %v1092, %v1120
    %v1131 = vsub.f32 %v1097, %v1123
    %v1132 = vmul.f32 %v1124, 1.442695
    %v1133 = vpow.pop %v1132
    %v1134 = vmul.f32 %v1125, 1.442695
    %v1135 = vpow.pop %v1134
    %v1136 = vmul.f32 %v1126, 1.442695
    %v1137 = vpow.pop %v1136
    %v1138 = vmul.f32 %v1127, 1.442695
    %v1139 = vpow.pop %v1138
    %v1140 = vmul.f32 %v1128, 1.442695
    %v1141 = vpow.pop %v1140
    %v1142 = vmul.f32 %v1129, 1.442695
    %v1143 = vpow.pop %v1142
    %v1144 = vmul.f32 %v1130, 1.442695
    %v1145 = vpow.pop %v1144
    %v1146 = vmul.f32 %v1131, 1.442695
    %v1147 = vpow.pop %v1146
    %v1148 = vsel %vm397, %v1133, 0.0
    %1149 = vadd.xlane.f32.xlu0 %v1148
    %v1150 = vpop.xlane.xlu0 %1149
    %v1151 = vsel %vm397, %v1135, 0.0
    %1152 = vadd.xlane.f32.xlu0 %v1151
    %v1153 = vpop.xlane.xlu0 %1152
    %v1154 = vsel %vm397, %v1137, 0.0
    %1155 = vadd.xlane.f32.xlu0 %v1154
    %v1156 = vpop.xlane.xlu0 %1155
    %v1157 = vsel %vm397, %v1139, 0.0
    %1158 = vadd.xlane.f32.xlu0 %v1157
    %v1159 = vpop.xlane.xlu0 %1158
    %v1160 = vsel %vm397, %v1141, 0.0
    %1161 = vadd.xlane.f32.xlu0 %v1160
    %v1162 = vpop.xlane.xlu0 %1161
    %v1163 = vsel %vm397, %v1143, 0.0
    %1164 = vadd.xlane.f32.xlu0 %v1163
    %v1165 = vpop.xlane.xlu0 %1164
    %v1166 = vsel %vm397, %v1145, 0.0
    %1167 = vadd.xlane.f32.xlu0 %v1166
    %v1168 = vpop.xlane.xlu0 %1167
    %v1169 = vsel %vm397, %v1147, 0.0
    %1170 = vadd.xlane.f32.xlu0 %v1169
    %v1171 = vpop.xlane.xlu0 %1170
    %v1172 = vrcp.pop %v1150
    %v1173 = vrcp.pop %v1153
    %v1174 = vrcp.pop %v1156
    %v1175 = vrcp.pop %v1159
    %v1176 = vrcp.pop %v1162
    %v1177 = vrcp.pop %v1165
    %v1178 = vrcp.pop %v1168
    %v1179 = vrcp.pop %v1171
    %v1180 = vmul.f32 %v1133, %v1172
    %v1181 = vmul.f32 %v1135, %v1173
    %v1182 = vmul.f32 %v1137, %v1174
    %v1183 = vmul.f32 %v1139, %v1175
    %v1184 = vmul.f32 %v1141, %v1176
    %v1185 = vmul.f32 %v1143, %v1177
    %v1186 = vmul.f32 %v1145, %v1178
    %v1187 = vmul.f32 %v1147, %v1179
    %1188 = vrot.lane.b32.xlu0 %v947, 64
    %v1189 = vpop.permute.xlu0 %1188
    %1190 = vrot.lane.b32.xlu0 %v950, 64
    %v1191 = vpop.permute.xlu0 %1190
    %v1195 = vsel %vm397, %v1180, 0
    %v1198 = vsel %vm397, %v1181, 0
    %v1201 = vsel %vm397, %v1182, 0
    %v1204 = vsel %vm397, %v1183, 0
    %v1207 = vsel %vm397, %v1184, 0
    %v1210 = vsel %vm397, %v1185, 0
    %v1213 = vsel %vm397, %v1186, 0
    %v1216 = vsel %vm397, %v1187, 0
    %1218 = vmatprep.subr.mxu0 0.0
    %1219 = vmatpush1.msra.mxu0 %v1189
    %1220 = vmatprep.subr.mxu0 0.0
    %1221 = vmatpush1.msra.mxu0 %v1191
    %1222 = vmatprep.subr.mxu0 0.0
    %1223 = vmatpush1.msra.mxu0 0.0
    %1224 = vmatprep.subr.mxu0 0.0
    %1225 = vmatpush1.msra.mxu0 0.0
    %1226 = vmatprep.subr.mxu0 0.0
    %1227 = vmatpush1.msra.mxu0 0.0
    %1228 = vmatprep.subr.mxu0 0.0
    %1229 = vmatpush1.msra.mxu0 0.0
    %1230 = vmatprep.subr.mxu0 0.0
    %1231 = vmatpush1.msra.mxu0 0.0
    %1232 = vmatprep.subr.mxu0 0.0
    %1233 = vmatpush1.msra.mxu0 0.0
    %1234 = vmatprep.subr.mxu0 0.0
    %1235 = vmatpush1.msra.mxu0 0.0
    %1236 = vmatprep.subr.mxu0 0.0
    %1237 = vmatpush1.msra.mxu0 0.0
    %1238 = vmatprep.subr.mxu0 0.0
    %1239 = vmatpush1.msra.mxu0 0.0
    %1240 = vmatprep.subr.mxu0 0.0
    %1241 = vmatpush1.msra.mxu0 0.0
    %1242 = vmatprep.subr.mxu0 0.0
    %1243 = vmatpush1.msra.mxu0 0.0
    %1244 = vmatprep.subr.mxu0 0.0
    %1245 = vmatpush1.msra.mxu0 0.0
    %1246 = vmatprep.subr.mxu0 0.0
    %1247 = vmatpush1.msra.mxu0 0.0
    %1248 = vmatprep.subr.mxu0 0.0
    %1249 = vmatpush1.msra.mxu0 0.0
    %1250 = vmatprep.subr.mxu0 0.0
    %1251 = vmatpush1.msra.mxu0 0.0
    %1252 = vmatprep.subr.mxu0 0.0
    %1253 = vmatpush1.msra.mxu0 0.0
    %1254 = vmatprep.subr.mxu0 0.0
    %1255 = vmatpush1.msra.mxu0 0.0
    %1256 = vmatprep.subr.mxu0 0.0
    %1257 = vmatpush1.msra.mxu0 0.0
    %1258 = vmatprep.subr.mxu0 0.0
    %1259 = vmatpush1.msra.mxu0 0.0
    %1260 = vmatprep.subr.mxu0 0.0
    %1261 = vmatpush1.msra.mxu0 0.0
    %1262 = vmatprep.subr.mxu0 0.0
    %1263 = vmatpush1.msra.mxu0 0.0
    %1264 = vmatprep.subr.mxu0 0.0
    %1265 = vmatpush1.msra.mxu0 0.0
    %1266 = vmatprep.subr.mxu0 0.0
    %1267 = vmatpush1.msra.mxu0 0.0
    %1268 = vmatprep.subr.mxu0 0.0
    %1269 = vmatpush1.msra.mxu0 0.0
    %1270 = vmatprep.subr.mxu0 0.0
    %1271 = vmatpush1.msra.mxu0 0.0
    %1272 = vmatprep.subr.mxu0 0.0
    %1273 = vmatpush1.msra.mxu0 0.0
    %1274 = vmatprep.subr.mxu0 0.0
    %1275 = vmatpush1.msra.mxu0 0.0
    %1276 = vmatprep.subr.mxu0 0.0
    %1277 = vmatpush1.msra.mxu0 0.0
    %1278 = vmatprep.subr.mxu0 0.0
    %1279 = vmatpush1.msra.mxu0 0.0
    %1280 = vmatprep.subr.mxu0 0.0
    %1281 = vmatpush1.msra.mxu0 0.0
    %1282 = vmatprep.mubr.f32.mxu0 0.0
    %1283 = vmatmul.mubr.f32.gmra.mrb[0].mxu0 %v1195
    %v1284 = vpop.f32.mrb[0].mxu0
    %v1285 = vadd.f32 0.0, %v1284
    %v1286 = vpop.f32.mrb[0].mxu0
    %1287 = vmatprep.mubr.f32.mxu0 0.0
    %1288 = vmatmul.mubr.f32.gmra.mrb[0].mxu0 %v1198
    %v1289 = vpop.f32.mrb[0].mxu0
    %v1290 = vadd.f32 0.0, %v1289
    %v1291 = vpop.f32.mrb[0].mxu0
    %1292 = vmatprep.mubr.f32.mxu0 0.0
    %1293 = vmatmul.mubr.f32.gmra.mrb[0].mxu0 %v1201
    %v1294 = vpop.f32.mrb[0].mxu0
    %v1295 = vadd.f32 0.0, %v1294
    %v1296 = vpop.f32.mrb[0].mxu0
    %1297 = vmatprep.mubr.f32.mxu0 0.0
    %1298 = vmatmul.mubr.f32.gmra.mrb[0].mxu0 %v1204
    %v1299 = vpop.f32.mrb[0].mxu0
    %v1300 = vadd.f32 0.0, %v1299
    %v1301 = vpop.f32.mrb[0].mxu0
    %1302 = vmatprep.mubr.f32.mxu0 0.0
    %1303 = vmatmul.mubr.f32.gmra.mrb[0].mxu0 %v1207
    %v1304 = vpop.f32.mrb[0].mxu0
    %v1305 = vadd.f32 0.0, %v1304
    %v1306 = vpop.f32.mrb[0].mxu0
    %1307 = vmatprep.mubr.f32.mxu0 0.0
    %1308 = vmatmul.mubr.f32.gmra.mrb[0].mxu0 %v1210
    %v1309 = vpop.f32.mrb[0].mxu0
    %v1310 = vadd.f32 0.0, %v1309
    %v1311 = vpop.f32.mrb[0].mxu0
    %1312 = vmatprep.mubr.f32.mxu0 0.0
    %1313 = vmatmul.mubr.f32.gmra.mrb[0].mxu0 %v1213
    %v1314 = vpop.f32.mrb[0].mxu0
    %v1315 = vadd.f32 0.0, %v1314
    %v1316 = vpop.f32.mrb[0].mxu0
    %1317 = vmatprep.mubr.f32.mxu0 0.0
    %1318 = vmatmul.mubr.f32.gmra.mrb[0].mxu0 %v1216
    %v1319 = vpop.f32.mrb[0].mxu0
    %v1320 = vadd.f32 0.0, %v1319
    %v1321 = vpop.f32.mrb[0].mxu0
    %1322 = vdwg.mxu0
    %v1323 = vmul.f32 %v1285, %v146
    %v1324 = vmul.f32 %v1290, %v147
    %v1325 = vmul.f32 %v1295, %v148
    %v1326 = vmul.f32 %v1300, %v149
    %v1327 = vmul.f32 %v1305, %v150
    %v1328 = vmul.f32 %v1310, %v151
    %v1329 = vmul.f32 %v1315, %v152
    %v1330 = vmul.f32 %v1320, %v153
    %v1331 = vadd.f32 %v1323, %v1325
    %v1332 = vadd.f32 %v1324, %v1326
    %v1333 = vadd.f32 %v1331, %v1327
    %v1334 = vadd.f32 %v1332, %v1328
    %v1335 = vadd.f32 %v1333, %v1329
    %v1336 = vadd.f32 %v1334, %v1330
    %v1337 = vpack.c.bf16 %v1336, %v1335
    %s1338 = scalar_lea.vmem %s6, 16
    %v1339 = vld [vmem:[%s1338] sm:$0xf]
    %v1340 = vld [vmem:[%s1338 + $0x4] sm:$0xf]
    %v1341 = vld [vmem:[%s1338 + $0x8] sm:$0xf]
    %v1342 = vld [vmem:[%s1338 + $0xc] sm:$0xf]
    %v1347 = vunpack.c.l.b16 %v1339
    %v1348 = vunpack.c.l.b16 %v1340
    %v1349 = vunpack.c.l.b16 %v1341
    %v1350 = vunpack.c.l.b16 %v1342
    %v1351 = vpack.c.b16 %v1348, %v1347
    %v1352 = vpack.c.b16 %v1350, %v1349
    %v1356 = vsel %vm165, %v1337, 0
    %1358 = vmatprep.subr.bf16.mxu0 0
    %1359 = vmatpush1.bf16.msra.mxu0 %v1351
    %1360 = vmatprep.subr.bf16.mxu0 0
    %1361 = vmatpush1.bf16.msra.mxu0 %v1352
    %1362 = vmatprep.subr.bf16.mxu0 0
    %1363 = vmatpush1.bf16.msra.mxu0 0
    %1364 = vmatprep.subr.bf16.mxu0 0
    %1365 = vmatpush1.bf16.msra.mxu0 0
    %1366 = vmatprep.subr.bf16.mxu0 0
    %1367 = vmatpush1.bf16.msra.mxu0 0
    %1368 = vmatprep.subr.bf16.mxu0 0
    %1369 = vmatpush1.bf16.msra.mxu0 0
    %1370 = vmatprep.subr.bf16.mxu0 0
    %1371 = vmatpush1.bf16.msra.mxu0 0
    %1372 = vmatprep.subr.bf16.mxu0 0
    %1373 = vmatpush1.bf16.msra.mxu0 0
    %1374 = vmatprep.subr.bf16.mxu0 0
    %1375 = vmatpush1.bf16.msra.mxu0 0
    %1376 = vmatprep.subr.bf16.mxu0 0
    %1377 = vmatpush1.bf16.msra.mxu0 0
    %1378 = vmatprep.subr.bf16.mxu0 0
    %1379 = vmatpush1.bf16.msra.mxu0 0
    %1380 = vmatprep.subr.bf16.mxu0 0
    %1381 = vmatpush1.bf16.msra.mxu0 0
    %1382 = vmatprep.subr.bf16.mxu0 0
    %1383 = vmatpush1.bf16.msra.mxu0 0
    %1384 = vmatprep.subr.bf16.mxu0 0
    %1385 = vmatpush1.bf16.msra.mxu0 0
    %1386 = vmatprep.subr.bf16.mxu0 0
    %1387 = vmatpush1.bf16.msra.mxu0 0
    %1388 = vmatprep.subr.bf16.mxu0 0
    %1389 = vmatpush1.bf16.msra.mxu0 0
    %1390 = vmatprep.mubr.bf16.mxu0 0
    %1391 = vmatmul.mubr.bf16.gmra.mrb[0].mxu0 %v1356
    %v1392 = vpop.f32.mrb[0].mxu0
    %v1393 = vadd.f32 0.0, %v1392
    %v1394 = vpop.f32.mrb[0].mxu0
    %v1395 = vpop.f32.mrb[0].mxu0
    %v1396 = vadd.f32 0.0, %v1395
    %v1397 = vpop.f32.mrb[0].mxu0
    %1398 = vdwg.mxu0
    %v1399 = vadd.f32 %v863, %v1393
    %v1400 = vadd.f32 %v864, %v1396
    %s1401 = scalar_lea.vmem %s7, 1
    %v1402 = vld [vmem:[%s1401] sm:$0x1]
    %v1403 = vmul.f32 %v1399, %v1399
    %v1404 = vmul.f32 %v1400, %v1400
    %v1405 = vsel %vm165, %v1403, 0.0
    %1406 = vadd.xlane.f32.xlu0 %v1405
    %v1407 = vpop.xlane.xlu0 %1406
    %v1408 = vsel %vm165, %v1404, 0.0
    %1409 = vadd.xlane.f32.xlu0 %v1408
    %v1410 = vpop.xlane.xlu0 %1409
    %v1411 = vmul.f32 %v1407, %v172
    %v1412 = vmul.f32 %v1410, %v172
    %v1413 = vadd.f32 %v1411, 1e-06
    %v1414 = vadd.f32 %v1412, 1e-06
    %v1415 = vrsqrt.pop %v1413
    %v1416 = vrsqrt.pop %v1414
    %v1417 = vmul.f32 %v1399, %v1415
    %v1418 = vmul.f32 %v1400, %v1416
    %v1420 = vlaneseq
    %v1421 = vshrl.u32 %v1420, 7
    %v1422 = vsub.s32 0, %v1421
    %v1423 = vrot.slane %v1402, %v1422
    %v1425 = vmul.f32 %v1417, %v1423
    %v1426 = vmul.f32 %v1418, %v1423
    %v1427 = vpack.c.bf16 %v1426, %v1425
    %s1428 = scalar_lea.vmem %s8, 16
    %v1429 = vld [vmem:[%s1428] sm:$0xf]
    %v1430 = vld [vmem:[%s1428 + $0x4] sm:$0xf]
    %v1431 = vld [vmem:[%s1428 + $0x8] sm:$0xf]
    %v1432 = vld [vmem:[%s1428 + $0xc] sm:$0xf]
    %v1437 = vunpack.c.l.b16 %v1429
    %v1438 = vunpack.c.l.b16 %v1430
    %v1439 = vunpack.c.l.b16 %v1431
    %v1440 = vunpack.c.l.b16 %v1432
    %v1441 = vpack.c.b16 %v1438, %v1437
    %v1442 = vpack.c.b16 %v1440, %v1439
    %v1446 = vsel %vm165, %v1427, 0
    %1448 = vmatprep.subr.bf16.mxu0 0
    %1449 = vmatpush1.bf16.msra.mxu0 %v1441
    %1450 = vmatprep.subr.bf16.mxu0 0
    %1451 = vmatpush1.bf16.msra.mxu0 %v1442
    %1452 = vmatprep.subr.bf16.mxu0 0
    %1453 = vmatpush1.bf16.msra.mxu0 0
    %1454 = vmatprep.subr.bf16.mxu0 0
    %1455 = vmatpush1.bf16.msra.mxu0 0
    %1456 = vmatprep.subr.bf16.mxu0 0
    %1457 = vmatpush1.bf16.msra.mxu0 0
    %1458 = vmatprep.subr.bf16.mxu0 0
    %1459 = vmatpush1.bf16.msra.mxu0 0
    %1460 = vmatprep.subr.bf16.mxu0 0
    %1461 = vmatpush1.bf16.msra.mxu0 0
    %1462 = vmatprep.subr.bf16.mxu0 0
    %1463 = vmatpush1.bf16.msra.mxu0 0
    %1464 = vmatprep.subr.bf16.mxu0 0
    %1465 = vmatpush1.bf16.msra.mxu0 0
    %1466 = vmatprep.subr.bf16.mxu0 0
    %1467 = vmatpush1.bf16.msra.mxu0 0
    %1468 = vmatprep.subr.bf16.mxu0 0
    %1469 = vmatpush1.bf16.msra.mxu0 0
    %1470 = vmatprep.subr.bf16.mxu0 0
    %1471 = vmatpush1.bf16.msra.mxu0 0
    %1472 = vmatprep.subr.bf16.mxu0 0
    %1473 = vmatpush1.bf16.msra.mxu0 0
    %1474 = vmatprep.subr.bf16.mxu0 0
    %1475 = vmatpush1.bf16.msra.mxu0 0
    %1476 = vmatprep.subr.bf16.mxu0 0
    %1477 = vmatpush1.bf16.msra.mxu0 0
    %1478 = vmatprep.subr.bf16.mxu0 0
    %1479 = vmatpush1.bf16.msra.mxu0 0
    %1480 = vmatprep.mubr.bf16.mxu0 0
    %1481 = vmatmul.mubr.bf16.gmra.mrb[0].mxu0 %v1446
    %v1482 = vpop.f32.mrb[0].mxu0
    %v1483 = vadd.f32 0.0, %v1482
    %v1484 = vpop.f32.mrb[0].mxu0
    %v1485 = vpop.f32.mrb[0].mxu0
    %v1486 = vadd.f32 0.0, %v1485
    %v1487 = vpop.f32.mrb[0].mxu0
    %1488 = vdwg.mxu0
    %v1489 = vmax.f32 %v1483, 0.0
    %v1490 = vmax.f32 %v1486, 0.0
    %v1491 = vpack.c.bf16 %v1490, %v1489
    %s1492 = scalar_lea.vmem %s9, 32
    %v1493 = vld [vmem:[%s1492] sm:$0xf]
    %v1494 = vld [vmem:[%s1492 + $0x4] sm:$0xf]
    %v1495 = vld [vmem:[%s1492 + $0x8] sm:$0xf]
    %v1496 = vld [vmem:[%s1492 + $0xc] sm:$0xf]
    %v1497 = vld [vmem:[%s1492 + $0x10] sm:$0xf]
    %v1498 = vld [vmem:[%s1492 + $0x14] sm:$0xf]
    %v1499 = vld [vmem:[%s1492 + $0x18] sm:$0xf]
    %v1500 = vld [vmem:[%s1492 + $0x1c] sm:$0xf]
    %v1509 = vunpack.c.l.b16 %v1493
    %v1510 = vunpack.c.l.b16 %v1494
    %v1511 = vunpack.c.l.b16 %v1495
    %v1512 = vunpack.c.l.b16 %v1496
    %v1513 = vunpack.c.l.b16 %v1497
    %v1514 = vunpack.c.l.b16 %v1498
    %v1515 = vunpack.c.l.b16 %v1499
    %v1516 = vunpack.c.l.b16 %v1500
    %v1517 = vpack.c.b16 %v1510, %v1509
    %v1518 = vpack.c.b16 %v1512, %v1511
    %v1519 = vpack.c.b16 %v1514, %v1513
    %v1520 = vpack.c.b16 %v1516, %v1515
    %v1526 = vsel %vm64, %v1491, 0
    %1528 = vmatprep.subr.bf16.mxu0 0
    %1529 = vmatpush1.bf16.msra.mxu0 %v1517
    %1530 = vmatprep.subr.bf16.mxu0 0
    %1531 = vmatpush1.bf16.msra.mxu0 %v1518
    %1532 = vmatprep.subr.bf16.mxu0 0
    %1533 = vmatpush1.bf16.msra.mxu0 %v1519
    %1534 = vmatprep.subr.bf16.mxu0 0
    %1535 = vmatpush1.bf16.msra.mxu0 %v1520
    %1536 = vmatprep.subr.bf16.mxu0 0
    %1537 = vmatpush1.bf16.msra.mxu0 0
    %1538 = vmatprep.subr.bf16.mxu0 0
    %1539 = vmatpush1.bf16.msra.mxu0 0
    %1540 = vmatprep.subr.bf16.mxu0 0
    %1541 = vmatpush1.bf16.msra.mxu0 0
    %1542 = vmatprep.subr.bf16.mxu0 0
    %1543 = vmatpush1.bf16.msra.mxu0 0
    %1544 = vmatprep.subr.bf16.mxu0 0
    %1545 = vmatpush1.bf16.msra.mxu0 0
    %1546 = vmatprep.subr.bf16.mxu0 0
    %1547 = vmatpush1.bf16.msra.mxu0 0
    %1548 = vmatprep.subr.bf16.mxu0 0
    %1549 = vmatpush1.bf16.msra.mxu0 0
    %1550 = vmatprep.subr.bf16.mxu0 0
    %1551 = vmatpush1.bf16.msra.mxu0 0
    %1552 = vmatprep.subr.bf16.mxu0 0
    %1553 = vmatpush1.bf16.msra.mxu0 0
    %1554 = vmatprep.subr.bf16.mxu0 0
    %1555 = vmatpush1.bf16.msra.mxu0 0
    %1556 = vmatprep.subr.bf16.mxu0 0
    %1557 = vmatpush1.bf16.msra.mxu0 0
    %1558 = vmatprep.subr.bf16.mxu0 0
    %1559 = vmatpush1.bf16.msra.mxu0 0
    %1560 = vmatprep.mubr.bf16.mxu0 0
    %1561 = vmatmul.mubr.bf16.gmra.mrb[0].mxu0 %v1526
    %v1562 = vpop.f32.mrb[0].mxu0
    %v1563 = vadd.f32 0.0, %v1562
    %v1564 = vpop.f32.mrb[0].mxu0
    %v1565 = vpop.f32.mrb[0].mxu0
    %v1566 = vadd.f32 0.0, %v1565
    %v1567 = vpop.f32.mrb[0].mxu0
    %1568 = vdwg.mxu0
    %v1569 = vadd.f32 %v1399, %v1563
    %v1570 = vadd.f32 %v1400, %v1566
    %v1571 = vld [vmem:[%s10] sm:$0x1]
    %v1572 = vmul.f32 %v1569, %v1569
    %v1573 = vmul.f32 %v1570, %v1570
    %v1574 = vsel %vm165, %v1572, 0.0
    %1575 = vadd.xlane.f32.xlu0 %v1574
    %v1576 = vpop.xlane.xlu0 %1575
    %v1577 = vsel %vm165, %v1573, 0.0
    %1578 = vadd.xlane.f32.xlu0 %v1577
    %v1579 = vpop.xlane.xlu0 %1578
    %v1580 = vmul.f32 %v1576, %v172
    %v1581 = vmul.f32 %v1579, %v172
    %v1582 = vadd.f32 %v1580, 1e-06
    %v1583 = vadd.f32 %v1581, 1e-06
    %v1584 = vrsqrt.pop %v1582
    %v1585 = vrsqrt.pop %v1583
    %v1586 = vmul.f32 %v1569, %v1584
    %v1587 = vmul.f32 %v1570, %v1585
    %v1589 = vlaneseq
    %v1590 = vshrl.u32 %v1589, 7
    %v1591 = vsub.s32 0, %v1590
    %v1592 = vrot.slane %v1571, %v1591
    %v1594 = vmul.f32 %v1586, %v1592
    %v1595 = vmul.f32 %v1587, %v1592
    %1596 = vst.msk [vmem:[#allocation2] sm:$0xff] %vm165, %v1594
    %1597 = vst.msk [vmem:[#allocation2 + $0x8] sm:$0xff] %vm165, %v1595
    // Predicated region
    $region46: #{simplified_t5_encoder.1} parent=1 // pred_check
      _
    $region47: #{simplified_t5_encoder.1} parent=1 // pred_check_branch
      %1599 = sbr.rel (0) target = $region49
    $region48: #{simplified_t5_encoder.1} parent=1 // pred_region
      %s1601 = ssub.s32 256, 256
      %1602 = vsyncadd [#allocation3], %s1601
      %s1603 = sshll.u32 [#allocation2], 4
      %s1604 = int_to_ptr.vmem [resolvable:$true] %s1603
      %1609 = dma.vmem_to_hbm [thread:$0]  %s1604, 256, %s11, [#allocation3], 128, 128, 8
    $region49: #{simplified_t5_encoder.1} parent=1 // pred_fallthru
      _
    // Predicated region
    $region50: #{simplified_t5_encoder.1} parent=1 // pred_check
      _
    $region51: #{simplified_t5_encoder.1} parent=1 // pred_check_branch
      %1611 = sbr.rel (0) target = $region53
    $region52: #{simplified_t5_encoder.1} parent=1 // pred_region
      %1612 = dma.done [#allocation3], 256
    $region53: #{simplified_t5_encoder.1} parent=1 // pred_fallthru
      _
    %1613 = vsyncpa [#allocation3], 1

</llo_original>
